<compile_context>
chip_gen: v5e
topology: v5e:2x2
jax: 0.10.0
libtpu: 0.0.40
codegen_flags: <defaults>
</compile_context>

<pallas_src>
from functools import partial

import jax
import jax.numpy as jnp
from jax.experimental import pallas as pl
from jax.experimental.pallas import tpu as pltpu

LANE = 128
TILE_B = 128        # batch rows per grid step (128 on v5e; 256 also fine on v6e/v7x)
GS_LANE_OFF = 64    # graph-state lanes 64:68 (must be >= outChs)
N_MLP_W = 6         # w1, w2(fused), w3, w4, w5, w6
N_GCN_W = 3         # wg1, wg2, wg4
N_BIAS = 9          # b1..b6, bg1, bg2, bg4


# --------------------------------------------------------------------------- #
# Kernel
# --------------------------------------------------------------------------- #
def _fc_model_graph_kernel(x_ref, w_ref, gw_ref, b_ref, g_ref, out_ref):
    f32, bf16 = jnp.float32, jnp.bfloat16

    def wblk(i):    # (128,128) bf16 MLP weight block
        return w_ref[:, i * LANE:(i + 1) * LANE]

    def gwblk(i):   # (128,128) f32 GCN weight block
        return gw_ref[:, i * LANE:(i + 1) * LANE]

    def bias(i):    # (1,128) f32 bias row
        return b_ref[:, i * LANE:(i + 1) * LANE]

    w1, w2, w3, w4, w5, w6 = (wblk(i) for i in range(N_MLP_W))
    wg1, wg2, wg4 = (gwblk(i) for i in range(N_GCN_W))
    b1, b2, b3, b4, b5, b6, bg1, bg2, bg4 = (bias(i) for i in range(N_BIAS))

    rows = g_ref.shape[0]                       # ceil(N/8)*8, static
    a_hat = g_ref[:, 0:LANE]                    # (rows,128); cols >= N are zero
    h0 = g_ref[:, LANE:2 * LANE]                # (rows,128) = A_hat @ feat (pre-packed)
    vcol = g_ref[:, 2 * LANE:3 * LANE]          # (rows,128) mean row of A_hat,
                                                # lane-broadcast; rows >= N zero

    fdot = lambda a, b: jnp.dot(a, b, preferred_element_type=f32)

    # ---- GCN: conv1 -> relu -> conv2 -> relu -> (conv4 + mean_nodes folded) --
    h1 = jnp.maximum(fdot(h0, wg1) + bg1, 0.0)                        # (rows,128)
    if rows < LANE:                                                   # static pad
        h1p = jnp.concatenate(
            [h1, jnp.zeros((LANE - rows, LANE), f32)], axis=0)        # (128,128)
    else:
        h1p = h1
    h2 = jnp.maximum(fdot(fdot(a_hat, h1p), wg2) + bg2, 0.0)          # (rows,128)
    red = jnp.sum(h2 * vcol, axis=0, keepdims=True)                   # (1,128) = v @ h2
    gs = fdot(red, wg4) + bg4                   # (1,128); values live in lanes 64:68

    # ---- MLP head (bf16 MXU operands, f32 accumulation) ----------------------
    bdot = lambda a, b: jnp.dot(a, b, preferred_element_type=f32)
    xb = x_ref[...].astype(bf16)                                      # (TILE_B,128)
    y1 = jnp.maximum(bdot(xb, w1) + b1, 0.0)                          # fc1 + relu (f32)
    y_cat = (y1 + gs).astype(bf16)              # fused cat: gs occupies lanes 64:68
    y2 = jnp.maximum(bdot(y_cat, w2) + b2, 0.0) + y1                  # fc2 + relu + res
    y3 = jnp.maximum(bdot(y2.astype(bf16), w3) + b3, 0.0)             # fc3 + relu
    y4 = jnp.maximum(bdot(y3.astype(bf16), w4) + b4, 0.0) + y3        # fc4 + relu + res
    y5 = jnp.maximum(bdot(y4.astype(bf16), w5) + b5, 0.0)             # fc5 + relu
    y6 = bdot(y5.astype(bf16), w6) + b6         # fc6; lanes >= outChs are exactly 0

    out_ref[...] = y6 + gs                      # lanes 0:outChs = y, lanes 64:68 = gs


# --------------------------------------------------------------------------- #
# Host-side packing
# --------------------------------------------------------------------------- #
def _pad_block(w, rows=LANE, cols=LANE, row_off=0, col_off=0, dtype=jnp.float32):
    w = jnp.asarray(w, dtype)
    r, c = w.shape
    assert row_off + r <= rows and col_off + c <= cols
    return jnp.zeros((rows, cols), dtype).at[row_off:row_off + r,
                                             col_off:col_off + c].set(w)


def _pad_row(v, off=0):
    v = jnp.asarray(v, jnp.float32).reshape(1, -1)
    assert off + v.shape[1] <= LANE
    return jnp.zeros((1, LANE), jnp.float32).at[:, off:off + v.shape[1]].set(v)


def init_params(key, num_feats, out_chs):
    """Weights like nn.Linear default; Linear biases zero (module init); GCN
    biases nonzero to exercise the padded-row filtering."""
    ks = jax.random.split(key, 12)

    def w(k, shape):
        bound = 1.0 / jnp.sqrt(jnp.float32(shape[0]))
        return jax.random.uniform(k, shape, jnp.float32, -bound, bound)

    zero = lambda n: jnp.zeros((n,), jnp.float32)

    # GCN(7, 12, 4): conv1, conv2, conv4 (conv3 exists in the module but is unused)
    wg1, wg2, wg4 = w(ks[0], (7, 12)), w(ks[1], (12, 12)), w(ks[2], (12, 4))
    bg1 = 0.1 * jax.random.normal(ks[3], (12,), jnp.float32)
    bg2 = 0.1 * jax.random.normal(ks[4], (12,), jnp.float32)
    bg4 = 0.1 * jax.random.normal(ks[5], (4,), jnp.float32)

    w1 = w(ks[6], (num_feats, 64))
    w2 = w(ks[7], (64 + 4, 64))       # unsplit; fused into one MXU block
    w3 = w(ks[8], (64, 64))
    w4 = w(ks[9], (64, 64))
    w5 = w(ks[10], (64, 32))
    w6 = w(ks[11], (32, out_chs))
    b1, b2, b3, b4, b5, b6 = zero(64), zero(64), zero(64), zero(64), zero(32), zero(out_chs)

    return (wg1, bg1, wg2, bg2, wg4, bg4,
            w1, b1, w2, b2, w3, b3, w4, b4, w5, b5, w6, b6)


def pack_weights(params):
    """Pack once per set of weights (graph-independent)."""
    (wg1, bg1, wg2, bg2, wg4, bg4,
     w1, b1, w2, b2, w3, b3, w4, b4, w5, b5, w6, b6) = params
    assert w6.shape[1] <= GS_LANE_OFF, "fc6 lanes must not overlap graph-state lanes"

    wslab = jnp.concatenate(
        [_pad_block(w, dtype=jnp.bfloat16) for w in (w1, w2, w3, w4, w5, w6)], axis=1)

    gwslab = jnp.concatenate(
        [_pad_block(wg1), _pad_block(wg2),
         _pad_block(wg4, col_off=GS_LANE_OFF)], axis=1)

    bslab = jnp.concatenate(
        [_pad_row(b1), _pad_row(b2), _pad_row(b3), _pad_row(b4), _pad_row(b5),
         _pad_row(b6), _pad_row(bg1), _pad_row(bg2),
         _pad_row(bg4, off=GS_LANE_OFF)], axis=1)

    return wslab, gwslab, bslab


def pack_graph(a_hat, feat):
    """Pack once per graph: A_hat, h0 = A_hat @ feat, and the mean-row column."""
    a_hat = jnp.asarray(a_hat, jnp.float32)
    feat = jnp.asarray(feat, jnp.float32)
    n = a_hat.shape[0]
    assert n <= LANE, "graphs with more than 128 nodes need node tiling"
    rows = max(8, ((n + 7) // 8) * 8)
    a_blk = _pad_block(a_hat, rows=rows, cols=LANE)
    h0_blk = _pad_block(a_hat @ feat, rows=rows, cols=LANE)   # conv1's A @ X, hoisted
    v = a_hat.mean(axis=0)                                    # (1/N) * 1^T * A_hat
    vcol = _pad_block(jnp.tile(v[:, None], (1, LANE)), rows=rows, cols=LANE)
    return jnp.concatenate([a_blk, h0_blk, vcol], axis=1)


# --------------------------------------------------------------------------- #
# Forward wrapper
# --------------------------------------------------------------------------- #
@partial(jax.jit, static_argnames=("num_feats", "out_chs"))
def fc_model_graph_forward(x, wslab, gwslab, bslab, gdat, *, num_feats, out_chs):
    assert out_chs <= GS_LANE_OFF
    x = x.reshape(-1, num_feats).astype(jnp.float32)
    b = x.shape[0]
    b_pad = max(TILE_B, ((b + TILE_B - 1) // TILE_B) * TILE_B)
    x_slab = jnp.zeros((b_pad, LANE), jnp.float32).at[:b, :num_feats].set(x)

    res = pl.pallas_call(
        _fc_model_graph_kernel,
        out_shape=jax.ShapeDtypeStruct((b_pad, LANE), jnp.float32),
        grid=(b_pad // TILE_B,),
        in_specs=[
            pl.BlockSpec((TILE_B, LANE), lambda i: (i, 0)),       # x tile
            pl.BlockSpec(wslab.shape, lambda i: (0, 0)),          # MLP weights (resident)
            pl.BlockSpec(gwslab.shape, lambda i: (0, 0)),         # GCN weights (resident)
            pl.BlockSpec(bslab.shape, lambda i: (0, 0)),          # biases (resident)
            pl.BlockSpec(gdat.shape, lambda i: (0, 0)),           # graph data (resident)
        ],
        out_specs=pl.BlockSpec((TILE_B, LANE), lambda i: (i, 0)),
        compiler_params=pltpu.CompilerParams(dimension_semantics=("parallel",)),
    )(x_slab, wslab, gwslab, bslab, gdat)

    out = res[:b, :out_chs]                             # (B, outChs)
    gs = res[0, GS_LANE_OFF:GS_LANE_OFF + 4]            # (4,) graph state
    return out, gs


# --------------------------------------------------------------------------- #
# Pure-JAX reference (unfolded math, f32) and graph construction
# --------------------------------------------------------------------------- #
def reference_forward(x, a_hat, feat, params):
    (wg1, bg1, wg2, bg2, wg4, bg4,
     w1, b1, w2, b2, w3, b3, w4, b4, w5, b5, w6, b6) = params
    h = a_hat @ feat
    h = jnp.maximum(h @ wg1 + bg1, 0.0)
    h = a_hat @ h
    h = jnp.maximum(h @ wg2 + bg2, 0.0)
    h = a_hat @ h
    h = h @ wg4 + bg4
    gs = jnp.mean(h, axis=0, keepdims=True)             # (1, 4)

    y = jnp.maximum(x @ w1 + b1, 0.0)
    y_res = y
    cat = jnp.concatenate([y, jnp.broadcast_to(gs, (x.shape[0], 4))], axis=1)
    y = jnp.maximum(cat @ w2 + b2, 0.0) + y_res
    y = jnp.maximum(y @ w3 + b3, 0.0)
    y_res = y
    y = jnp.maximum(y @ w4 + b4, 0.0) + y_res
    y = jnp.maximum(y @ w5 + b5, 0.0)
    y = y @ w6 + b6
    return y, gs.reshape(-1)


def build_graph(key, n_nodes, n_feats):
    """Ring graph + self-loops with symmetric 'both' normalization (A_hat)."""
    idx = jnp.arange(n_nodes)
    adj = jnp.zeros((n_nodes, n_nodes), jnp.float32)
    adj = adj.at[idx, (idx + 1) % n_nodes].set(1.0)
    adj = adj.at[(idx + 1) % n_nodes, idx].set(1.0)
    adj = adj + jnp.eye(n_nodes, dtype=jnp.float32)      # dgl.add_self_loop
    deg = adj.sum(axis=1)
    d_inv_sqrt = 1.0 / jnp.sqrt(deg)
    a_hat = adj * d_inv_sqrt[:, None] * d_inv_sqrt[None, :]
    feat = jax.random.normal(key, (n_nodes, n_feats), jnp.float32)
    return a_hat, feat


if __name__ == "__main__":
    NUM_FEATS = 24    # numFeats
    OUT_CHS = 10      # outChs
    N_NODES = 8       # small synthetic graph; node feature dim 7 (GCN(7,12,4))
    BATCH = 200       # ragged on purpose; wrapper pads to a multiple of TILE_B

    key = jax.random.PRNGKey(0)
    k_x, k_g, k_p = jax.random.split(key, 3)

    x = jax.random.normal(k_x, (BATCH, NUM_FEATS), jnp.float32)
    a_hat, feat = build_graph(k_g, N_NODES, 7)
    params = init_params(k_p, NUM_FEATS, OUT_CHS)

    wslab, gwslab, bslab = pack_weights(params)   # once per model
    gdat = pack_graph(a_hat, feat)                # once per graph

    out, graph_state = fc_model_graph_forward(
        x, wslab, gwslab, bslab, gdat, num_feats=NUM_FEATS, out_chs=OUT_CHS)
    jax.block_until_ready((out, graph_state))

    assert out.shape == (BATCH, OUT_CHS) and graph_state.shape == (4,)

    out_ref, gs_ref = reference_forward(x, a_hat, feat, params)
    assert jnp.allclose(graph_state, gs_ref, rtol=1e-3, atol=1e-4), (graph_state, gs_ref)
    assert jnp.allclose(out, out_ref, rtol=5e-2, atol=5e-2), (
        float(jnp.max(jnp.abs(out - out_ref))))
    assert bool(jnp.all(jnp.isfinite(out))) and bool(jnp.all(jnp.isfinite(graph_state)))

    print("KERNEL_OK")
</pallas_src>

<mosaic_0001>
module attributes {stable_mosaic.version = 11 : i64} {
  func.func @_fc_model_graph_kernel(%arg0: i32, %arg1: memref<128x128xf32, #tpu.memory_space<vmem>>, %arg2: memref<128x768xbf16, #tpu.memory_space<vmem>>, %arg3: memref<128x384xf32, #tpu.memory_space<vmem>>, %arg4: memref<1x1152xf32, #tpu.memory_space<vmem>>, %arg5: memref<8x384xf32, #tpu.memory_space<vmem>>, %arg6: memref<128x128xf32, #tpu.memory_space<vmem>>) attributes {dimension_semantics = [#tpu.dimension_semantics<parallel>], iteration_bounds = array<i64: 2>, scalar_prefetch = 0 : i64, scratch_operands = 0 : i64, tpu.core_type = #tpu.core_type<tc>, window_params = [{transform_indices = @transform_0, window_bounds = array<i64: 128, 128>}, {pipeline_mode = #tpu.pipeline_mode<synchronous>, transform_indices = @transform_1, window_bounds = array<i64: 128, 768>}, {pipeline_mode = #tpu.pipeline_mode<synchronous>, transform_indices = @transform_2, window_bounds = array<i64: 128, 384>}, {pipeline_mode = #tpu.pipeline_mode<synchronous>, transform_indices = @transform_3, window_bounds = array<i64: 1, 1152>}, {pipeline_mode = #tpu.pipeline_mode<synchronous>, transform_indices = @transform_4, window_bounds = array<i64: 8, 384>}, {transform_indices = @transform_5, window_bounds = array<i64: 128, 128>}]} {
    %c0 = arith.constant 0 : index
    %c0_0 = arith.constant 0 : index
    %0 = vector.load %arg2[%c0, %c0_0] : memref<128x768xbf16, #tpu.memory_space<vmem>>, vector<128x128xbf16>
    %c0_1 = arith.constant 0 : index
    %c128 = arith.constant 128 : index
    %1 = vector.load %arg2[%c0_1, %c128] : memref<128x768xbf16, #tpu.memory_space<vmem>>, vector<128x128xbf16>
    %c0_2 = arith.constant 0 : index
    %c256 = arith.constant 256 : index
    %2 = vector.load %arg2[%c0_2, %c256] : memref<128x768xbf16, #tpu.memory_space<vmem>>, vector<128x128xbf16>
    %c0_3 = arith.constant 0 : index
    %c384 = arith.constant 384 : index
    %3 = vector.load %arg2[%c0_3, %c384] : memref<128x768xbf16, #tpu.memory_space<vmem>>, vector<128x128xbf16>
    %c0_4 = arith.constant 0 : index
    %c512 = arith.constant 512 : index
    %4 = vector.load %arg2[%c0_4, %c512] : memref<128x768xbf16, #tpu.memory_space<vmem>>, vector<128x128xbf16>
    %c0_5 = arith.constant 0 : index
    %c640 = arith.constant 640 : index
    %5 = vector.load %arg2[%c0_5, %c640] : memref<128x768xbf16, #tpu.memory_space<vmem>>, vector<128x128xbf16>
    %c0_6 = arith.constant 0 : index
    %c0_7 = arith.constant 0 : index
    %6 = vector.load %arg3[%c0_6, %c0_7] : memref<128x384xf32, #tpu.memory_space<vmem>>, vector<128x128xf32>
    %c0_8 = arith.constant 0 : index
    %c128_9 = arith.constant 128 : index
    %7 = vector.load %arg3[%c0_8, %c128_9] : memref<128x384xf32, #tpu.memory_space<vmem>>, vector<128x128xf32>
    %c0_10 = arith.constant 0 : index
    %c256_11 = arith.constant 256 : index
    %8 = vector.load %arg3[%c0_10, %c256_11] : memref<128x384xf32, #tpu.memory_space<vmem>>, vector<128x128xf32>
    %c0_12 = arith.constant 0 : index
    %c0_13 = arith.constant 0 : index
    %9 = vector.load %arg4[%c0_12, %c0_13] : memref<1x1152xf32, #tpu.memory_space<vmem>>, vector<1x128xf32>
    %c0_14 = arith.constant 0 : index
    %c128_15 = arith.constant 128 : index
    %10 = vector.load %arg4[%c0_14, %c128_15] : memref<1x1152xf32, #tpu.memory_space<vmem>>, vector<1x128xf32>
    %c0_16 = arith.constant 0 : index
    %c256_17 = arith.constant 256 : index
    %11 = vector.load %arg4[%c0_16, %c256_17] : memref<1x1152xf32, #tpu.memory_space<vmem>>, vector<1x128xf32>
    %c0_18 = arith.constant 0 : index
    %c384_19 = arith.constant 384 : index
    %12 = vector.load %arg4[%c0_18, %c384_19] : memref<1x1152xf32, #tpu.memory_space<vmem>>, vector<1x128xf32>
    %c0_20 = arith.constant 0 : index
    %c512_21 = arith.constant 512 : index
    %13 = vector.load %arg4[%c0_20, %c512_21] : memref<1x1152xf32, #tpu.memory_space<vmem>>, vector<1x128xf32>
    %c0_22 = arith.constant 0 : index
    %c640_23 = arith.constant 640 : index
    %14 = vector.load %arg4[%c0_22, %c640_23] : memref<1x1152xf32, #tpu.memory_space<vmem>>, vector<1x128xf32>
    %c0_24 = arith.constant 0 : index
    %c768 = arith.constant 768 : index
    %15 = vector.load %arg4[%c0_24, %c768] : memref<1x1152xf32, #tpu.memory_space<vmem>>, vector<1x128xf32>
    %c0_25 = arith.constant 0 : index
    %c896 = arith.constant 896 : index
    %16 = vector.load %arg4[%c0_25, %c896] : memref<1x1152xf32, #tpu.memory_space<vmem>>, vector<1x128xf32>
    %c0_26 = arith.constant 0 : index
    %c1024 = arith.constant 1024 : index
    %17 = vector.load %arg4[%c0_26, %c1024] : memref<1x1152xf32, #tpu.memory_space<vmem>>, vector<1x128xf32>
    %c0_27 = arith.constant 0 : index
    %c0_28 = arith.constant 0 : index
    %18 = vector.load %arg5[%c0_27, %c0_28] : memref<8x384xf32, #tpu.memory_space<vmem>>, vector<8x128xf32>
    %c0_29 = arith.constant 0 : index
    %c128_30 = arith.constant 128 : index
    %19 = vector.load %arg5[%c0_29, %c128_30] : memref<8x384xf32, #tpu.memory_space<vmem>>, vector<8x128xf32>
    %c0_31 = arith.constant 0 : index
    %c256_32 = arith.constant 256 : index
    %20 = vector.load %arg5[%c0_31, %c256_32] : memref<8x384xf32, #tpu.memory_space<vmem>>, vector<8x128xf32>
    %cst = arith.constant dense<0.000000e+00> : vector<8x128xf32>
    %21 = tpu.matmul %19, %6, %cst {dimension_numbers = #tpu.dot_dimension_numbers<[1], [0], [0], [1], [0, 0, 1, 1], [], []>} : vector<8x128xf32>, vector<128x128xf32>, vector<8x128xf32> -> vector<8x128xf32>
    %22 = vector.broadcast %15 : vector<1x128xf32> to vector<8x128xf32>
    %23 = arith.addf %21, %22 : vector<8x128xf32>
    %cst_33 = arith.constant 0.000000e+00 : f32
    %24 = vector.broadcast %cst_33 : f32 to vector<8x128xf32>
    %25 = arith.maximumf %23, %24 : vector<8x128xf32>
    %cst_34 = arith.constant 0.000000e+00 : f32
    %26 = vector.broadcast %cst_34 : f32 to vector<120x128xf32>
    %27 = tpu.concatenate %25, %26 in 0 : vector<8x128xf32>, vector<120x128xf32> -> vector<128x128xf32>
    %cst_35 = arith.constant dense<0.000000e+00> : vector<8x128xf32>
    %28 = tpu.matmul %18, %27, %cst_35 {dimension_numbers = #tpu.dot_dimension_numbers<[1], [0], [0], [1], [0, 0, 1, 1], [], []>} : vector<8x128xf32>, vector<128x128xf32>, vector<8x128xf32> -> vector<8x128xf32>
    %cst_36 = arith.constant dense<0.000000e+00> : vector<8x128xf32>
    %29 = tpu.matmul %28, %7, %cst_36 {dimension_numbers = #tpu.dot_dimension_numbers<[1], [0], [0], [1], [0, 0, 1, 1], [], []>} : vector<8x128xf32>, vector<128x128xf32>, vector<8x128xf32> -> vector<8x128xf32>
    %30 = vector.broadcast %16 : vector<1x128xf32> to vector<8x128xf32>
    %31 = arith.addf %29, %30 : vector<8x128xf32>
    %cst_37 = arith.constant 0.000000e+00 : f32
    %32 = vector.broadcast %cst_37 : f32 to vector<8x128xf32>
    %33 = arith.maximumf %31, %32 : vector<8x128xf32>
    %34 = arith.mulf %33, %20 : vector<8x128xf32>
    %cst_38 = arith.constant dense<0.000000e+00> : vector<128xf32>
    %35 = vector.multi_reduction <add>, %34, %cst_38 [0] : vector<8x128xf32> to vector<128xf32>
    %36 = vector.shape_cast %35 : vector<128xf32> to vector<1x128xf32>
    %cst_39 = arith.constant dense<0.000000e+00> : vector<1x128xf32>
    %37 = tpu.matmul %36, %8, %cst_39 {dimension_numbers = #tpu.dot_dimension_numbers<[1], [0], [0], [1], [0, 0, 1, 1], [], []>} : vector<1x128xf32>, vector<128x128xf32>, vector<1x128xf32> -> vector<1x128xf32>
    %38 = arith.addf %37, %17 : vector<1x128xf32>
    %c0_40 = arith.constant 0 : index
    %c0_41 = arith.constant 0 : index
    %39 = vector.load %arg1[%c0_40, %c0_41] : memref<128x128xf32, #tpu.memory_space<vmem>>, vector<128x128xf32>
    %40 = arith.truncf %39 : vector<128x128xf32> to vector<128x128xbf16>
    %cst_42 = arith.constant dense<0.000000e+00> : vector<128x128xf32>
    %41 = tpu.matmul %40, %0, %cst_42 {dimension_numbers = #tpu.dot_dimension_numbers<[1], [0], [0], [1], [0, 0, 1, 1], [], []>} : vector<128x128xbf16>, vector<128x128xbf16>, vector<128x128xf32> -> vector<128x128xf32>
    %42 = vector.broadcast %9 : vector<1x128xf32> to vector<128x128xf32>
    %43 = arith.addf %41, %42 : vector<128x128xf32>
    %cst_43 = arith.constant 0.000000e+00 : f32
    %44 = vector.broadcast %cst_43 : f32 to vector<128x128xf32>
    %45 = arith.maximumf %43, %44 : vector<128x128xf32>
    %46 = vector.broadcast %38 : vector<1x128xf32> to vector<128x128xf32>
    %47 = arith.addf %45, %46 : vector<128x128xf32>
    %48 = arith.truncf %47 : vector<128x128xf32> to vector<128x128xbf16>
    %cst_44 = arith.constant dense<0.000000e+00> : vector<128x128xf32>
    %49 = tpu.matmul %48, %1, %cst_44 {dimension_numbers = #tpu.dot_dimension_numbers<[1], [0], [0], [1], [0, 0, 1, 1], [], []>} : vector<128x128xbf16>, vector<128x128xbf16>, vector<128x128xf32> -> vector<128x128xf32>
    %50 = vector.broadcast %10 : vector<1x128xf32> to vector<128x128xf32>
    %51 = arith.addf %49, %50 : vector<128x128xf32>
    %cst_45 = arith.constant 0.000000e+00 : f32
    %52 = vector.broadcast %cst_45 : f32 to vector<128x128xf32>
    %53 = arith.maximumf %51, %52 : vector<128x128xf32>
    %54 = arith.addf %53, %45 : vector<128x128xf32>
    %55 = arith.truncf %54 : vector<128x128xf32> to vector<128x128xbf16>
    %cst_46 = arith.constant dense<0.000000e+00> : vector<128x128xf32>
    %56 = tpu.matmul %55, %2, %cst_46 {dimension_numbers = #tpu.dot_dimension_numbers<[1], [0], [0], [1], [0, 0, 1, 1], [], []>} : vector<128x128xbf16>, vector<128x128xbf16>, vector<128x128xf32> -> vector<128x128xf32>
    %57 = vector.broadcast %11 : vector<1x128xf32> to vector<128x128xf32>
    %58 = arith.addf %56, %57 : vector<128x128xf32>
    %cst_47 = arith.constant 0.000000e+00 : f32
    %59 = vector.broadcast %cst_47 : f32 to vector<128x128xf32>
    %60 = arith.maximumf %58, %59 : vector<128x128xf32>
    %61 = arith.truncf %60 : vector<128x128xf32> to vector<128x128xbf16>
    %cst_48 = arith.constant dense<0.000000e+00> : vector<128x128xf32>
    %62 = tpu.matmul %61, %3, %cst_48 {dimension_numbers = #tpu.dot_dimension_numbers<[1], [0], [0], [1], [0, 0, 1, 1], [], []>} : vector<128x128xbf16>, vector<128x128xbf16>, vector<128x128xf32> -> vector<128x128xf32>
    %63 = vector.broadcast %12 : vector<1x128xf32> to vector<128x128xf32>
    %64 = arith.addf %62, %63 : vector<128x128xf32>
    %cst_49 = arith.constant 0.000000e+00 : f32
    %65 = vector.broadcast %cst_49 : f32 to vector<128x128xf32>
    %66 = arith.maximumf %64, %65 : vector<128x128xf32>
    %67 = arith.addf %66, %60 : vector<128x128xf32>
    %68 = arith.truncf %67 : vector<128x128xf32> to vector<128x128xbf16>
    %cst_50 = arith.constant dense<0.000000e+00> : vector<128x128xf32>
    %69 = tpu.matmul %68, %4, %cst_50 {dimension_numbers = #tpu.dot_dimension_numbers<[1], [0], [0], [1], [0, 0, 1, 1], [], []>} : vector<128x128xbf16>, vector<128x128xbf16>, vector<128x128xf32> -> vector<128x128xf32>
    %70 = vector.broadcast %13 : vector<1x128xf32> to vector<128x128xf32>
    %71 = arith.addf %69, %70 : vector<128x128xf32>
    %cst_51 = arith.constant 0.000000e+00 : f32
    %72 = vector.broadcast %cst_51 : f32 to vector<128x128xf32>
    %73 = arith.maximumf %71, %72 : vector<128x128xf32>
    %74 = arith.truncf %73 : vector<128x128xf32> to vector<128x128xbf16>
    %cst_52 = arith.constant dense<0.000000e+00> : vector<128x128xf32>
    %75 = tpu.matmul %74, %5, %cst_52 {dimension_numbers = #tpu.dot_dimension_numbers<[1], [0], [0], [1], [0, 0, 1, 1], [], []>} : vector<128x128xbf16>, vector<128x128xbf16>, vector<128x128xf32> -> vector<128x128xf32>
    %76 = vector.broadcast %14 : vector<1x128xf32> to vector<128x128xf32>
    %77 = arith.addf %75, %76 : vector<128x128xf32>
    %78 = vector.broadcast %38 : vector<1x128xf32> to vector<128x128xf32>
    %79 = arith.addf %77, %78 : vector<128x128xf32>
    %c0_53 = arith.constant 0 : index
    %c0_54 = arith.constant 0 : index
    %80 = vector.load %arg6[%c0_53, %c0_54] : memref<128x128xf32, #tpu.memory_space<vmem>>, vector<128x128xf32>
    tpu.vector_store %arg6[%c0_53, %c0_54], %79 {strides = array<i32>} : memref<128x128xf32, #tpu.memory_space<vmem>>, vector<128x128xf32>,
    return
  }
  func.func @transform_0(%arg0: i32) -> (i32, i32) {
    %c0_i32 = arith.constant 0 : i32
    %c0_i32_0 = arith.constant 0 : i32
    return %arg0, %c0_i32 : i32, i32
  }
  func.func @transform_1(%arg0: i32) -> (i32, i32) {
    %c0_i32 = arith.constant 0 : i32
    %c0_i32_0 = arith.constant 0 : i32
    %c0_i32_1 = arith.constant 0 : i32
    return %c0_i32, %c0_i32_0 : i32, i32
  }
  func.func @transform_2(%arg0: i32) -> (i32, i32) {
    %c0_i32 = arith.constant 0 : i32
    %c0_i32_0 = arith.constant 0 : i32
    %c0_i32_1 = arith.constant 0 : i32
    return %c0_i32, %c0_i32_0 : i32, i32
  }
  func.func @transform_3(%arg0: i32) -> (i32, i32) {
    %c0_i32 = arith.constant 0 : i32
    %c0_i32_0 = arith.constant 0 : i32
    %c0_i32_1 = arith.constant 0 : i32
    return %c0_i32, %c0_i32_0 : i32, i32
  }
  func.func @transform_4(%arg0: i32) -> (i32, i32) {
    %c0_i32 = arith.constant 0 : i32
    %c0_i32_0 = arith.constant 0 : i32
    %c0_i32_1 = arith.constant 0 : i32
    return %c0_i32, %c0_i32_0 : i32, i32
  }
  func.func @transform_5(%arg0: i32) -> (i32, i32) {
    %c0_i32 = arith.constant 0 : i32
    %c0_i32_0 = arith.constant 0 : i32
    return %arg0, %c0_i32 : i32, i32
  }
}

</mosaic_0001>

<llo_original>
// kernel: fc_model_graph_forward.1
$region0: #{fc_model_graph_forward.1}
  #allocation0 [shape = 'u32[]', space=smem, size = 0x4, offset = 0x4, fixed_abs, tag = 'smem constant byte address 0x4 - core index']
  #allocation1 [shape = 'u32[72,128]{1,0:T(1,128)}', space=vmem, size = 0x9000, scoped, tag = 'internal scratch']
  %s0 = inlined_call_operand.vmem [shape: f32[256,128], index: 0, kind: input, shape index: {}]
  %s1 = inlined_call_operand.vmem [shape: bf16[128,768], index: 1, kind: input, shape index: {}]
  %s2 = inlined_call_operand.hbm [shape: f32[128,384], index: 2, kind: input, shape index: {}]
  %s3 = inlined_call_operand.vmem [shape: f32[1,1152], index: 3, kind: input, shape index: {}]
  %s4 = inlined_call_operand.vmem [shape: f32[8,384], index: 4, kind: input, shape index: {}]
  %s5 = inlined_call_operand.vmem [shape: f32[256,128], index: 5, kind: output, shape index: {}]
  %s6 = sld [smem:[#allocation0]]
  $region57: #{fc_model_graph_forward.1} parent=0
    _
  %s8 = ssub.s32 1, %s6
  %s9 = scalar_select 0, %s8, %s6
  $region1: #{fc_model_graph_forward.1} parent=0
    #allocation2 [shape = 'u8[196608]{0}', space=vmem, size = 0x30000, scoped, tag = 'input window, operand 2, single buffered']
    #allocation3 [shape = 's32[2]{0}', space=sflag, size = 0x8, scoped, tag = 'scoped memory for fc_model_graph_forward.1']
    %10 = vsyncpa [#allocation3], 0
    loop: start=0, step=1, limit=4
    $region2: #{fc_model_graph_forward.1} parent=1 // loop_pre_header
      _
    $region3: #{fc_model_graph_forward.1} parent=1 // loop_header
      %s12 = sphi 0, %s16
      %p13 = scmp.ge.s32.totalorder %s12, 4
      %s22 = sphi 0, %s24
      %s25 = sphi 0, %s22
      %s26 = sphi 0, %s25
      %s42 = sphi 0, %s26
      %s46 = sphi 0, %s46
      %s48 = sphi 0, %s46
      %s49 = sphi 0, %s48
      %s63 = sphi 0, %s49
      %s67 = sphi 0, %s67
      %s69 = sphi 0, %s67
      %s70 = sphi 0, %s69
      %s84 = sphi 0, %s70
      %s88 = sphi 0, %s88
      %s90 = sphi 0, %s88
      %s91 = sphi 0, %s90
      %s105 = sphi 0, %s91
      %s109 = sphi 0, %s109
      %s111 = sphi 0, %s109
      %s112 = sphi 0, %s111
      %s126 = sphi 0, %s112
      %s132 = sphi 0, %s134
      %s135 = sphi 0, %s132
      %s136 = sphi 0, %s135
      %s152 = sphi 0, %s136
    $region4: #{fc_model_graph_forward.1} parent=1 // loop_header_branch
      %15 = sbr.rel (%p13) target = $region8
    $region5: #{fc_model_graph_forward.1} parent=1 // loop_body
      %s17 = ssub.s32 %s12, 1
      %s18 = ssub.s32 %s12, 2
      %s19 = sadd.s32 %s12, 1
      %s20 = ssub.s32 %s12, %s19
      %p21 = scmp.eq.s32.totalorder %s20, 0
      %s23 = sadd.s32 %s22, 1
      %s24 = scalar_select %p21, %s22, %s23
      %p27 = pneg %p21
      %p28 = scmp.eq.s32.totalorder %s12, 1
      %p29 = por %p27, %p28
      %p30 = scmp.ne.s32.totalorder %s22, %s25
      %p31 = scmp.eq.s32.totalorder %s12, 0
      %p32 = por %p30, %p31
      %p33 = scmp.ne.s32.totalorder %s22, %s25
      %p34 = scmp.eq.s32.totalorder %s17, 1
      %p35 = por %p33, %p34
      %p36 = scmp.ne.s32.totalorder %s25, %s26
      %p37 = scmp.eq.s32.totalorder %s17, 0
      %p38 = por %p36, %p37
      %p39 = scmp.ne.s32.totalorder %s25, %s26
      %p40 = scmp.eq.s32.totalorder %s18, 1
      %p41 = por %p39, %p40
      %p43 = scmp.ne.s32.totalorder %s26, %s42
      %p44 = scmp.eq.s32.totalorder %s18, 0
      %p45 = por %p43, %p44
      %s47 = sadd.s32 %s46, 1
      %p50 = scmp.eq.s32.totalorder %s12, 1
      %p51 = scmp.ne.s32.totalorder %s46, %s48
      %p52 = scmp.eq.s32.totalorder %s12, 0
      %p53 = por %p51, %p52
      %p54 = scmp.ne.s32.totalorder %s46, %s48
      %p55 = scmp.eq.s32.totalorder %s17, 1
      %p56 = por %p54, %p55
      %p57 = scmp.ne.s32.totalorder %s48, %s49
      %p58 = scmp.eq.s32.totalorder %s17, 0
      %p59 = por %p57, %p58
      %p60 = scmp.ne.s32.totalorder %s48, %s49
      %p61 = scmp.eq.s32.totalorder %s18, 1
      %p62 = por %p60, %p61
      %p64 = scmp.ne.s32.totalorder %s49, %s63
      %p65 = scmp.eq.s32.totalorder %s18, 0
      %p66 = por %p64, %p65
      %s68 = sadd.s32 %s67, 1
      %p71 = scmp.eq.s32.totalorder %s12, 1
      %p72 = scmp.ne.s32.totalorder %s67, %s69
      %p73 = scmp.eq.s32.totalorder %s12, 0
      %p74 = por %p72, %p73
      %p75 = scmp.ne.s32.totalorder %s67, %s69
      %p76 = scmp.eq.s32.totalorder %s17, 1
      %p77 = por %p75, %p76
      %p78 = scmp.ne.s32.totalorder %s69, %s70
      %p79 = scmp.eq.s32.totalorder %s17, 0
      %p80 = por %p78, %p79
      %p81 = scmp.ne.s32.totalorder %s69, %s70
      %p82 = scmp.eq.s32.totalorder %s18, 1
      %p83 = por %p81, %p82
      %p85 = scmp.ne.s32.totalorder %s70, %s84
      %p86 = scmp.eq.s32.totalorder %s18, 0
      %p87 = por %p85, %p86
      %s89 = sadd.s32 %s88, 1
      %p92 = scmp.eq.s32.totalorder %s12, 1
      %p93 = scmp.ne.s32.totalorder %s88, %s90
      %p94 = scmp.eq.s32.totalorder %s12, 0
      %p95 = por %p93, %p94
      %p96 = scmp.ne.s32.totalorder %s88, %s90
      %p97 = scmp.eq.s32.totalorder %s17, 1
      %p98 = por %p96, %p97
      %p99 = scmp.ne.s32.totalorder %s90, %s91
      %p100 = scmp.eq.s32.totalorder %s17, 0
      %p101 = por %p99, %p100
      %p102 = scmp.ne.s32.totalorder %s90, %s91
      %p103 = scmp.eq.s32.totalorder %s18, 1
      %p104 = por %p102, %p103
      %p106 = scmp.ne.s32.totalorder %s91, %s105
      %p107 = scmp.eq.s32.totalorder %s18, 0
      %p108 = por %p106, %p107
      %s110 = sadd.s32 %s109, 1
      %p113 = scmp.eq.s32.totalorder %s12, 1
      %p114 = scmp.ne.s32.totalorder %s109, %s111
      %p115 = scmp.eq.s32.totalorder %s12, 0
      %p116 = por %p114, %p115
      %p117 = scmp.ne.s32.totalorder %s109, %s111
      %p118 = scmp.eq.s32.totalorder %s17, 1
      %p119 = por %p117, %p118
      %p120 = scmp.ne.s32.totalorder %s111, %s112
      %p121 = scmp.eq.s32.totalorder %s17, 0
      %p122 = por %p120, %p121
      %p123 = scmp.ne.s32.totalorder %s111, %s112
      %p124 = scmp.eq.s32.totalorder %s18, 1
      %p125 = por %p123, %p124
      %p127 = scmp.ne.s32.totalorder %s112, %s126
      %p128 = scmp.eq.s32.totalorder %s18, 0
      %p129 = por %p127, %p128
      %s130 = ssub.s32 %s12, %s19
      %p131 = scmp.eq.s32.totalorder %s130, 0
      %s133 = sadd.s32 %s132, 1
      %s134 = scalar_select %p131, %s132, %s133
      %p137 = pneg %p131
      %p138 = scmp.eq.s32.totalorder %s12, 1
      %p139 = por %p137, %p138
      %p140 = scmp.ne.s32.totalorder %s132, %s135
      %p141 = scmp.eq.s32.totalorder %s12, 0
      %p142 = por %p140, %p141
      %p143 = scmp.ne.s32.totalorder %s132, %s135
      %p144 = scmp.eq.s32.totalorder %s17, 1
      %p145 = por %p143, %p144
      %p146 = scmp.ne.s32.totalorder %s135, %s136
      %p147 = scmp.eq.s32.totalorder %s17, 0
      %p148 = por %p146, %p147
      %p149 = scmp.ne.s32.totalorder %s135, %s136
      %p150 = scmp.eq.s32.totalorder %s18, 1
      %p151 = por %p149, %p150
      %p153 = scmp.ne.s32.totalorder %s136, %s152
      %p154 = scmp.eq.s32.totalorder %s18, 0
      %p155 = por %p153, %p154
      %p156 = scmp.le.s32.totalorder 1, %s12
      %p157 = scmp.lt.s32.totalorder %s12, 3
      %p158 = pnand %p156, %p157
      %p159 = pneg %p158
      // Predicated region
      $region9: #{fc_model_graph_forward.1} parent=5 // pred_check
        _
      $region10: #{fc_model_graph_forward.1} parent=5 // pred_check_branch
        %161 = sbr.rel (%p158) target = $region12
      $region11: #{fc_model_graph_forward.1} parent=5 // pred_region
        %s162 = ssub.s32 %s12, 1
        // Predicated region
        $region13: #{fc_model_graph_forward.1} parent=11 // pred_check
          %p163 = pneg %p59
        $region14: #{fc_model_graph_forward.1} parent=11 // pred_check_branch
          %165 = sbr.rel (%p163) target = $region16
        $region15: #{fc_model_graph_forward.1} parent=11 // pred_region
          _
        $region16: #{fc_model_graph_forward.1} parent=11 // pred_fallthru
          _
        // Predicated region
        $region17: #{fc_model_graph_forward.1} parent=11 // pred_check
          %p166 = pneg %p80
        $region18: #{fc_model_graph_forward.1} parent=11 // pred_check_branch
          %168 = sbr.rel (%p166) target = $region20
        $region19: #{fc_model_graph_forward.1} parent=11 // pred_region
          %170 = vsyncadd [#allocation3], 0
          %s171 = sshll.u32 %s2, 4
          %s172 = int_to_ptr.hbm [resolvable:$true] %s171
          %s173 = sshll.u32 [#allocation2], 4
          %s174 = int_to_ptr.vmem [resolvable:$true] %s173
          %179 = dma.hbm_to_vmem [thread:$0]  %s172, 6144, %s174, [#allocation3], 384, 384, 24
        $region20: #{fc_model_graph_forward.1} parent=11 // pred_fallthru
          _
        // Predicated region
        $region21: #{fc_model_graph_forward.1} parent=11 // pred_check
          %p180 = pneg %p101
        $region22: #{fc_model_graph_forward.1} parent=11 // pred_check_branch
          %182 = sbr.rel (%p180) target = $region24
        $region23: #{fc_model_graph_forward.1} parent=11 // pred_region
          _
        $region24: #{fc_model_graph_forward.1} parent=11 // pred_fallthru
          _
        // Predicated region
        $region25: #{fc_model_graph_forward.1} parent=11 // pred_check
          %p183 = pneg %p122
        $region26: #{fc_model_graph_forward.1} parent=11 // pred_check_branch
          %185 = sbr.rel (%p183) target = $region28
        $region27: #{fc_model_graph_forward.1} parent=11 // pred_region
          _
        $region28: #{fc_model_graph_forward.1} parent=11 // pred_fallthru
          _
      $region12: #{fc_model_graph_forward.1} parent=5 // pred_fallthru
        _
      %p186 = scmp.lt.s32.totalorder %s12, 2
      // Predicated region
      $region29: #{fc_model_graph_forward.1} parent=5 // pred_check
        %p187 = pneg %p186
      $region30: #{fc_model_graph_forward.1} parent=5 // pred_check_branch
        %189 = sbr.rel (%p187) target = $region32
      $region31: #{fc_model_graph_forward.1} parent=5 // pred_region
        // Predicated region
        $region33: #{fc_model_graph_forward.1} parent=31 // pred_check
          %p190 = pneg %p32
        $region34: #{fc_model_graph_forward.1} parent=31 // pred_check_branch
          %192 = sbr.rel (%p190) target = $region36
        $region35: #{fc_model_graph_forward.1} parent=31 // pred_region
          %s193 = smul.u32 16, %s12
          %p194 = scmp.lt.s32.totalorder %s193, 31
          %s195 = scalar_select %p194, %s193, 31
          %s196 = smul.addr %s195, 8
          %s197 = scalar_lea.vmem %s0, %s196
          %s198 = smul.u32 16, %s12
        $region36: #{fc_model_graph_forward.1} parent=31 // pred_fallthru
          _
      $region32: #{fc_model_graph_forward.1} parent=5 // pred_fallthru
        _
      %p199 = scmp.le.s32.totalorder 1, %s12
      %p200 = scmp.lt.s32.totalorder %s12, 3
      %p201 = pnand %p199, %p200
      %p202 = pneg %p201
      // Predicated region
      $region37: #{fc_model_graph_forward.1} parent=5 // pred_check
        _
      $region38: #{fc_model_graph_forward.1} parent=5 // pred_check_branch
        %204 = sbr.rel (%p201) target = $region40
      $region39: #{fc_model_graph_forward.1} parent=5 // pred_region
        %s205 = ssub.s32 %s12, 1
        // Predicated region
        $region41: #{fc_model_graph_forward.1} parent=39 // pred_check
          %p206 = pneg %p80
        $region42: #{fc_model_graph_forward.1} parent=39 // pred_check_branch
          %208 = sbr.rel (%p206) target = $region44
        $region43: #{fc_model_graph_forward.1} parent=39 // pred_region
          %210 = dma.done [#allocation3], 6144
        $region44: #{fc_model_graph_forward.1} parent=39 // pred_fallthru
          _
        %s211 = smul.u32 16, %s17
        %p212 = scmp.lt.s32.totalorder %s211, 31
        %s213 = scalar_select %p212, %s211, 31
        %s214 = smul.addr %s213, 8
        %s215 = scalar_lea.vmem %s0, %s214
        %p216 = pneg %p38
        %p217 = pneg %p35
        %p218 = pneg %p59
        %p219 = pneg %p56
        %p220 = pneg %p80
        %p221 = pneg %p77
        %p222 = pneg %p101
        %p223 = pneg %p98
        %p224 = pneg %p122
        %p225 = pneg %p119
        %p226 = pneg %p148
        %p227 = pneg %p145
        %s228 = smul.u32 16, %s17
        %p229 = scmp.lt.s32.totalorder %s228, 31
        %s230 = scalar_select %p229, %s228, 31
        %s231 = smul.addr %s230, 8
        %s232 = scalar_lea.vmem %s5, %s231
        %s233 = smul.u32 16, %s17
        %p234 = scmp.lt.s32.totalorder %s233, 31
        %s235 = scalar_select %p234, %s233, 31
        %s236 = smul.addr %s235, 8
        %s237 = scalar_lea.vmem %s0, %s236
        %s238 = smul.u32 16, %s17
        %s239 = smul.u32 16, %s17
        %p240 = scmp.lt.s32.totalorder %s239, 31
        %s241 = scalar_select %p240, %s239, 31
        %s242 = smul.addr %s241, 8
        %s243 = scalar_lea.vmem %s5, %s242
        %s244 = smul.u32 16, %s17
        %v245 = vld [vmem:[%s1] sm:$0xf]
        %v246 = vld [vmem:[%s1 + $0x18] sm:$0xf]
        %v247 = vld [vmem:[%s1 + $0x30] sm:$0xf]
        %v248 = vld [vmem:[%s1 + $0x48] sm:$0xf]
        %v249 = vld [vmem:[%s1 + $0x60] sm:$0xf]
        %v250 = vld [vmem:[%s1 + $0x78] sm:$0xf]
        %v251 = vld [vmem:[%s1 + $0x90] sm:$0xf]
        %v252 = vld [vmem:[%s1 + $0xa8] sm:$0xf]
        %v253 = vld [vmem:[%s1 + $0xc0] sm:$0xf]
        %v254 = vld [vmem:[%s1 + $0xd8] sm:$0xf]
        %v255 = vld [vmem:[%s1 + $0xf0] sm:$0xf]
        %v256 = vld [vmem:[%s1 + $0x108] sm:$0xf]
        %v257 = vld [vmem:[%s1 + $0x120] sm:$0xf]
        %v258 = vld [vmem:[%s1 + $0x138] sm:$0xf]
        %v259 = vld [vmem:[%s1 + $0x150] sm:$0xf]
        %v260 = vld [vmem:[%s1 + $0x168] sm:$0xf]
        %v261 = vld [vmem:[%s1 + $0x4] sm:$0xf]
        %v262 = vld [vmem:[%s1 + $0x1c] sm:$0xf]
        %v263 = vld [vmem:[%s1 + $0x34] sm:$0xf]
        %v264 = vld [vmem:[%s1 + $0x4c] sm:$0xf]
        %v265 = vld [vmem:[%s1 + $0x64] sm:$0xf]
        %v266 = vld [vmem:[%s1 + $0x7c] sm:$0xf]
        %v267 = vld [vmem:[%s1 + $0x94] sm:$0xf]
        %v268 = vld [vmem:[%s1 + $0xac] sm:$0xf]
        %v269 = vld [vmem:[%s1 + $0xc4] sm:$0xf]
        %v270 = vld [vmem:[%s1 + $0xdc] sm:$0xf]
        %v271 = vld [vmem:[%s1 + $0xf4] sm:$0xf]
        %v272 = vld [vmem:[%s1 + $0x10c] sm:$0xf]
        %v273 = vld [vmem:[%s1 + $0x124] sm:$0xf]
        %v274 = vld [vmem:[%s1 + $0x13c] sm:$0xf]
        %v275 = vld [vmem:[%s1 + $0x154] sm:$0xf]
        %v276 = vld [vmem:[%s1 + $0x16c] sm:$0xf]
        %v277 = vld [vmem:[%s1 + $0x8] sm:$0xf]
        %v278 = vld [vmem:[%s1 + $0x20] sm:$0xf]
        %v279 = vld [vmem:[%s1 + $0x38] sm:$0xf]
        %v280 = vld [vmem:[%s1 + $0x50] sm:$0xf]
        %v281 = vld [vmem:[%s1 + $0x68] sm:$0xf]
        %v282 = vld [vmem:[%s1 + $0x80] sm:$0xf]
        %v283 = vld [vmem:[%s1 + $0x98] sm:$0xf]
        %v284 = vld [vmem:[%s1 + $0xb0] sm:$0xf]
        %v285 = vld [vmem:[%s1 + $0xc8] sm:$0xf]
        %v286 = vld [vmem:[%s1 + $0xe0] sm:$0xf]
        %v287 = vld [vmem:[%s1 + $0xf8] sm:$0xf]
        %v288 = vld [vmem:[%s1 + $0x110] sm:$0xf]
        %v289 = vld [vmem:[%s1 + $0x128] sm:$0xf]
        %v290 = vld [vmem:[%s1 + $0x140] sm:$0xf]
        %v291 = vld [vmem:[%s1 + $0x158] sm:$0xf]
        %v292 = vld [vmem:[%s1 + $0x170] sm:$0xf]
        %v293 = vld [vmem:[%s1 + $0xc] sm:$0xf]
        %v294 = vld [vmem:[%s1 + $0x24] sm:$0xf]
        %v295 = vld [vmem:[%s1 + $0x3c] sm:$0xf]
        %v296 = vld [vmem:[%s1 + $0x54] sm:$0xf]
        %v297 = vld [vmem:[%s1 + $0x6c] sm:$0xf]
        %v298 = vld [vmem:[%s1 + $0x84] sm:$0xf]
        %v299 = vld [vmem:[%s1 + $0x9c] sm:$0xf]
        %v300 = vld [vmem:[%s1 + $0xb4] sm:$0xf]
        %v301 = vld [vmem:[%s1 + $0xcc] sm:$0xf]
        %v302 = vld [vmem:[%s1 + $0xe4] sm:$0xf]
        %v303 = vld [vmem:[%s1 + $0xfc] sm:$0xf]
        %v304 = vld [vmem:[%s1 + $0x114] sm:$0xf]
        %v305 = vld [vmem:[%s1 + $0x12c] sm:$0xf]
        %v306 = vld [vmem:[%s1 + $0x144] sm:$0xf]
        %v307 = vld [vmem:[%s1 + $0x15c] sm:$0xf]
        %v308 = vld [vmem:[%s1 + $0x174] sm:$0xf]
        %v309 = vld [vmem:[%s1 + $0x10] sm:$0xf]
        %v310 = vld [vmem:[%s1 + $0x28] sm:$0xf]
        %v311 = vld [vmem:[%s1 + $0x40] sm:$0xf]
        %v312 = vld [vmem:[%s1 + $0x58] sm:$0xf]
        %v313 = vld [vmem:[%s1 + $0x70] sm:$0xf]
        %v314 = vld [vmem:[%s1 + $0x88] sm:$0xf]
        %v315 = vld [vmem:[%s1 + $0xa0] sm:$0xf]
        %v316 = vld [vmem:[%s1 + $0xb8] sm:$0xf]
        %v317 = vld [vmem:[%s1 + $0xd0] sm:$0xf]
        %v318 = vld [vmem:[%s1 + $0xe8] sm:$0xf]
        %v319 = vld [vmem:[%s1 + $0x100] sm:$0xf]
        %v320 = vld [vmem:[%s1 + $0x118] sm:$0xf]
        %v321 = vld [vmem:[%s1 + $0x130] sm:$0xf]
        %v322 = vld [vmem:[%s1 + $0x148] sm:$0xf]
        %v323 = vld [vmem:[%s1 + $0x160] sm:$0xf]
        %v324 = vld [vmem:[%s1 + $0x178] sm:$0xf]
        %v325 = vld [vmem:[%s1 + $0x14] sm:$0xf]
        %v326 = vld [vmem:[%s1 + $0x2c] sm:$0xf]
        %v327 = vld [vmem:[%s1 + $0x44] sm:$0xf]
        %v328 = vld [vmem:[%s1 + $0x5c] sm:$0xf]
        %v329 = vld [vmem:[%s1 + $0x74] sm:$0xf]
        %v330 = vld [vmem:[%s1 + $0x8c] sm:$0xf]
        %v331 = vld [vmem:[%s1 + $0xa4] sm:$0xf]
        %v332 = vld [vmem:[%s1 + $0xbc] sm:$0xf]
        %v333 = vld [vmem:[%s1 + $0xd4] sm:$0xf]
        %v334 = vld [vmem:[%s1 + $0xec] sm:$0xf]
        %v335 = vld [vmem:[%s1 + $0x104] sm:$0xf]
        %v336 = vld [vmem:[%s1 + $0x11c] sm:$0xf]
        %v337 = vld [vmem:[%s1 + $0x134] sm:$0xf]
        %v338 = vld [vmem:[%s1 + $0x14c] sm:$0xf]
        %v339 = vld [vmem:[%s1 + $0x164] sm:$0xf]
        %v340 = vld [vmem:[%s1 + $0x17c] sm:$0xf]
        %v341 = vld [vmem:[#allocation2] sm:$0xff]
        %v342 = vld [vmem:[#allocation2 + $0x18] sm:$0xff]
        %v343 = vld [vmem:[#allocation2 + $0x30] sm:$0xff]
        %v344 = vld [vmem:[#allocation2 + $0x48] sm:$0xff]
        %v345 = vld [vmem:[#allocation2 + $0x60] sm:$0xff]
        %v346 = vld [vmem:[#allocation2 + $0x78] sm:$0xff]
        %v347 = vld [vmem:[#allocation2 + $0x90] sm:$0xff]
        %v348 = vld [vmem:[#allocation2 + $0xa8] sm:$0xff]
        %v349 = vld [vmem:[#allocation2 + $0xc0] sm:$0xff]
        %v350 = vld [vmem:[#allocation2 + $0xd8] sm:$0xff]
        %v351 = vld [vmem:[#allocation2 + $0xf0] sm:$0xff]
        %v352 = vld [vmem:[#allocation2 + $0x108] sm:$0xff]
        %v353 = vld [vmem:[#allocation2 + $0x120] sm:$0xff]
        %v354 = vld [vmem:[#allocation2 + $0x138] sm:$0xff]
        %v355 = vld [vmem:[#allocation2 + $0x150] sm:$0xff]
        %v356 = vld [vmem:[#allocation2 + $0x168] sm:$0xff]
        %v357 = vld [vmem:[#allocation2 + $0x8] sm:$0xff]
        %v358 = vld [vmem:[#allocation2 + $0x20] sm:$0xff]
        %v359 = vld [vmem:[#allocation2 + $0x38] sm:$0xff]
        %v360 = vld [vmem:[#allocation2 + $0x50] sm:$0xff]
        %v361 = vld [vmem:[#allocation2 + $0x68] sm:$0xff]
        %v362 = vld [vmem:[#allocation2 + $0x80] sm:$0xff]
        %v363 = vld [vmem:[#allocation2 + $0x98] sm:$0xff]
        %v364 = vld [vmem:[#allocation2 + $0xb0] sm:$0xff]
        %v365 = vld [vmem:[#allocation2 + $0xc8] sm:$0xff]
        %v366 = vld [vmem:[#allocation2 + $0xe0] sm:$0xff]
        %v367 = vld [vmem:[#allocation2 + $0xf8] sm:$0xff]
        %v368 = vld [vmem:[#allocation2 + $0x110] sm:$0xff]
        %v369 = vld [vmem:[#allocation2 + $0x128] sm:$0xff]
        %v370 = vld [vmem:[#allocation2 + $0x140] sm:$0xff]
        %v371 = vld [vmem:[#allocation2 + $0x158] sm:$0xff]
        %v372 = vld [vmem:[#allocation2 + $0x170] sm:$0xff]
        %v373 = vld [vmem:[#allocation2 + $0x10] sm:$0xff]
        %v374 = vld [vmem:[#allocation2 + $0x28] sm:$0xff]
        %v375 = vld [vmem:[#allocation2 + $0x40] sm:$0xff]
        %v376 = vld [vmem:[#allocation2 + $0x58] sm:$0xff]
        %v377 = vld [vmem:[#allocation2 + $0x70] sm:$0xff]
        %v378 = vld [vmem:[#allocation2 + $0x88] sm:$0xff]
        %v379 = vld [vmem:[#allocation2 + $0xa0] sm:$0xff]
        %v380 = vld [vmem:[#allocation2 + $0xb8] sm:$0xff]
        %v381 = vld [vmem:[#allocation2 + $0xd0] sm:$0xff]
        %v382 = vld [vmem:[#allocation2 + $0xe8] sm:$0xff]
        %v383 = vld [vmem:[#allocation2 + $0x100] sm:$0xff]
        %v384 = vld [vmem:[#allocation2 + $0x118] sm:$0xff]
        %v385 = vld [vmem:[#allocation2 + $0x130] sm:$0xff]
        %v386 = vld [vmem:[#allocation2 + $0x148] sm:$0xff]
        %v387 = vld [vmem:[#allocation2 + $0x160] sm:$0xff]
        %v388 = vld [vmem:[#allocation2 + $0x178] sm:$0xff]
        %v389 = vld [vmem:[%s3] sm:$0x1]
        %v390 = vld [vmem:[%s3 + $0x1] sm:$0x1]
        %v391 = vld [vmem:[%s3 + $0x2] sm:$0x1]
        %v392 = vld [vmem:[%s3 + $0x3] sm:$0x1]
        %v393 = vld [vmem:[%s3 + $0x4] sm:$0x1]
        %v394 = vld [vmem:[%s3 + $0x5] sm:$0x1]
        %v395 = vld [vmem:[%s3 + $0x6] sm:$0x1]
        %v396 = vld [vmem:[%s3 + $0x7] sm:$0x1]
        %v397 = vld [vmem:[%s3 + $0x8] sm:$0x1]
        %v398 = vld [vmem:[%s4] sm:$0xff]
        %v399 = vld [vmem:[%s4 + $0x8] sm:$0xff]
        %v400 = vld [vmem:[%s4 + $0x10] sm:$0xff]
        %v402 = vperm.slane %v395, 0
        %404 = vmatpush.msra.mxu0 %v356
        %405 = vmatpush.msra.mxu0 %v355
        %406 = vmatpush.msra.mxu0 %v354
        %407 = vmatpush.msra.mxu0 %v353
        %408 = vmatpush.msra.mxu0 %v352
        %409 = vmatpush.msra.mxu0 %v351
        %410 = vmatpush.msra.mxu0 %v350
        %411 = vmatpush.msra.mxu0 %v349
        %412 = vmatpush.msra.mxu0 %v348
        %413 = vmatpush.msra.mxu0 %v347
        %414 = vmatpush.msra.mxu0 %v346
        %415 = vmatpush.msra.mxu0 %v345
        %416 = vmatpush.msra.mxu0 %v344
        %417 = vmatpush.msra.mxu0 %v343
        %418 = vmatpush.msra.mxu0 %v342
        %419 = vmatpush.msra.mxu0 %v341
        %420 = vmatmul.f32.gmra.mxu0 %v399
        %v421 = vpop.f32.mrf.mxu0
        %v422 = vadd.f32 %v402, %v421
        %423 = vdwg.mxu0
        %v424 = vmax.f32 %v422, 0.0
        %425 = vmatpush.msra.mxu0 0.0
        %426 = vmatpush.msra.mxu0 0.0
        %427 = vmatpush.msra.mxu0 0.0
        %428 = vmatpush.msra.mxu0 0.0
        %429 = vmatpush.msra.mxu0 0.0
        %430 = vmatpush.msra.mxu0 0.0
        %431 = vmatpush.msra.mxu0 0.0
        %432 = vmatpush.msra.mxu0 0.0
        %433 = vmatpush.msra.mxu0 0.0
        %434 = vmatpush.msra.mxu0 0.0
        %435 = vmatpush.msra.mxu0 0.0
        %436 = vmatpush.msra.mxu0 0.0
        %437 = vmatpush.msra.mxu0 0.0
        %438 = vmatpush.msra.mxu0 0.0
        %439 = vmatpush.msra.mxu0 0.0
        %440 = vmatpush.msra.mxu0 %v424
        %441 = vmatmul.f32.gmra.mxu0 %v398
        %v442 = vpop.f32.mrf.mxu0
        %v443 = vadd.f32 0.0, %v442
        %444 = vdwg.mxu0
        %v446 = vperm.slane %v396, 0
        %448 = vmatpush.msra.mxu0 %v372
        %449 = vmatpush.msra.mxu0 %v371
        %450 = vmatpush.msra.mxu0 %v370
        %451 = vmatpush.msra.mxu0 %v369
        %452 = vmatpush.msra.mxu0 %v368
        %453 = vmatpush.msra.mxu0 %v367
        %454 = vmatpush.msra.mxu0 %v366
        %455 = vmatpush.msra.mxu0 %v365
        %456 = vmatpush.msra.mxu0 %v364
        %457 = vmatpush.msra.mxu0 %v363
        %458 = vmatpush.msra.mxu0 %v362
        %459 = vmatpush.msra.mxu0 %v361
        %460 = vmatpush.msra.mxu0 %v360
        %461 = vmatpush.msra.mxu0 %v359
        %462 = vmatpush.msra.mxu0 %v358
        %463 = vmatpush.msra.mxu0 %v357
        %464 = vmatmul.f32.gmra.mxu0 %v443
        %v465 = vpop.f32.mrf.mxu0
        %v466 = vadd.f32 %v446, %v465
        %467 = vdwg.mxu0
        %v468 = vmax.f32 %v466, 0.0
        %v469 = vmul.f32 %v468, %v400
        %v470 = vrot.slane %v469, 4
        %v471 = vadd.f32 %v469, %v470
        %v472 = vrot.slane %v471, 2
        %v473 = vadd.f32 %v471, %v472
        %v474 = vrot.slane %v473, 1
        %v475 = vadd.f32 %v473, %v474
        %476 = vmatpush.msra.mxu0 %v388
        %477 = vmatpush.msra.mxu0 %v387
        %478 = vmatpush.msra.mxu0 %v386
        %479 = vmatpush.msra.mxu0 %v385
        %480 = vmatpush.msra.mxu0 %v384
        %481 = vmatpush.msra.mxu0 %v383
        %482 = vmatpush.msra.mxu0 %v382
        %483 = vmatpush.msra.mxu0 %v381
        %484 = vmatpush.msra.mxu0 %v380
        %485 = vmatpush.msra.mxu0 %v379
        %486 = vmatpush.msra.mxu0 %v378
        %487 = vmatpush.msra.mxu0 %v377
        %488 = vmatpush.msra.mxu0 %v376
        %489 = vmatpush.msra.mxu0 %v375
        %490 = vmatpush.msra.mxu0 %v374
        %491 = vmatpush.msra.mxu0 %v373
        %492 = vmatmul.f32.gmra.mxu0 %v475
        %v493 = vpop.f32.mrf.mxu0
        %v494 = vadd.f32 %v397, %v493
        %495 = vdwg.mxu0
        %v496 = vld [vmem:[%s237] sm:$0xff]
        %v497 = vld [vmem:[%s237 + $0x8] sm:$0xff]
        %v498 = vld [vmem:[%s237 + $0x10] sm:$0xff]
        %v499 = vld [vmem:[%s237 + $0x18] sm:$0xff]
        %v500 = vld [vmem:[%s237 + $0x20] sm:$0xff]
        %v501 = vld [vmem:[%s237 + $0x28] sm:$0xff]
        %v502 = vld [vmem:[%s237 + $0x30] sm:$0xff]
        %v503 = vld [vmem:[%s237 + $0x38] sm:$0xff]
        %v504 = vld [vmem:[%s237 + $0x40] sm:$0xff]
        %v505 = vld [vmem:[%s237 + $0x48] sm:$0xff]
        %v506 = vld [vmem:[%s237 + $0x50] sm:$0xff]
        %v507 = vld [vmem:[%s237 + $0x58] sm:$0xff]
        %v508 = vld [vmem:[%s237 + $0x60] sm:$0xff]
        %v509 = vld [vmem:[%s237 + $0x68] sm:$0xff]
        %v510 = vld [vmem:[%s237 + $0x70] sm:$0xff]
        %v511 = vld [vmem:[%s237 + $0x78] sm:$0xff]
        %v512 = vpack.c.bf16 %v497, %v496
        %v513 = vpack.c.bf16 %v499, %v498
        %v514 = vpack.c.bf16 %v501, %v500
        %v515 = vpack.c.bf16 %v503, %v502
        %v516 = vpack.c.bf16 %v505, %v504
        %v517 = vpack.c.bf16 %v507, %v506
        %v518 = vpack.c.bf16 %v509, %v508
        %v519 = vpack.c.bf16 %v511, %v510
        %v521 = vperm.slane %v389, 0
        %v539 = vunpack.c.l.b16 %v245
        %v540 = vunpack.c.l.b16 %v246
        %v541 = vunpack.c.l.b16 %v247
        %v542 = vunpack.c.l.b16 %v248
        %v543 = vunpack.c.l.b16 %v249
        %v544 = vunpack.c.l.b16 %v250
        %v545 = vunpack.c.l.b16 %v251
        %v546 = vunpack.c.l.b16 %v252
        %v547 = vunpack.c.l.b16 %v253
        %v548 = vunpack.c.l.b16 %v254
        %v549 = vunpack.c.l.b16 %v255
        %v550 = vunpack.c.l.b16 %v256
        %v551 = vunpack.c.l.b16 %v257
        %v552 = vunpack.c.l.b16 %v258
        %v553 = vunpack.c.l.b16 %v259
        %v554 = vunpack.c.l.b16 %v260
        %v555 = vpack.c.b16 %v540, %v539
        %v556 = vpack.c.b16 %v542, %v541
        %v557 = vpack.c.b16 %v544, %v543
        %v558 = vpack.c.b16 %v546, %v545
        %v559 = vpack.c.b16 %v548, %v547
        %v560 = vpack.c.b16 %v550, %v549
        %v561 = vpack.c.b16 %v552, %v551
        %v562 = vpack.c.b16 %v554, %v553
        %571 = vmatpush.bf16.msra.mxu0 %v562
        %572 = vmatpush.bf16.msra.mxu0 %v561
        %573 = vmatpush.bf16.msra.mxu0 %v560
        %574 = vmatpush.bf16.msra.mxu0 %v559
        %575 = vmatpush.bf16.msra.mxu0 %v558
        %576 = vmatpush.bf16.msra.mxu0 %v557
        %577 = vmatpush.bf16.msra.mxu0 %v556
        %578 = vmatpush.bf16.msra.mxu0 %v555
        %579 = vmatmul.bf16.gmra.mxu0 %v512
        %v580 = vpop.f32.mrf.mxu0
        %v581 = vadd.f32 %v521, %v580
        %v582 = vpop.f32.mrf.mxu0
        %v583 = vadd.f32 %v521, %v582
        %584 = vmatmul.bf16.gmra.mxu0 %v513
        %v585 = vpop.f32.mrf.mxu0
        %v586 = vadd.f32 %v521, %v585
        %v587 = vpop.f32.mrf.mxu0
        %v588 = vadd.f32 %v521, %v587
        %589 = vmatmul.bf16.gmra.mxu0 %v514
        %v590 = vpop.f32.mrf.mxu0
        %v591 = vadd.f32 %v521, %v590
        %v592 = vpop.f32.mrf.mxu0
        %v593 = vadd.f32 %v521, %v592
        %594 = vmatmul.bf16.gmra.mxu0 %v515
        %v595 = vpop.f32.mrf.mxu0
        %v596 = vadd.f32 %v521, %v595
        %v597 = vpop.f32.mrf.mxu0
        %v598 = vadd.f32 %v521, %v597
        %599 = vmatmul.bf16.gmra.mxu0 %v516
        %v600 = vpop.f32.mrf.mxu0
        %v601 = vadd.f32 %v521, %v600
        %v602 = vpop.f32.mrf.mxu0
        %v603 = vadd.f32 %v521, %v602
        %604 = vmatmul.bf16.gmra.mxu0 %v517
        %v605 = vpop.f32.mrf.mxu0
        %v606 = vadd.f32 %v521, %v605
        %v607 = vpop.f32.mrf.mxu0
        %v608 = vadd.f32 %v521, %v607
        %609 = vmatmul.bf16.gmra.mxu0 %v518
        %v610 = vpop.f32.mrf.mxu0
        %v611 = vadd.f32 %v521, %v610
        %v612 = vpop.f32.mrf.mxu0
        %v613 = vadd.f32 %v521, %v612
        %614 = vmatmul.bf16.gmra.mxu0 %v519
        %v615 = vpop.f32.mrf.mxu0
        %v616 = vadd.f32 %v521, %v615
        %v617 = vpop.f32.mrf.mxu0
        %v618 = vadd.f32 %v521, %v617
        %619 = vdwg.mxu0
        %v620 = vmax.f32 %v581, 0.0
        %v621 = vmax.f32 %v583, 0.0
        %v622 = vmax.f32 %v586, 0.0
        %v623 = vmax.f32 %v588, 0.0
        %v624 = vmax.f32 %v591, 0.0
        %v625 = vmax.f32 %v593, 0.0
        %v626 = vmax.f32 %v596, 0.0
        %v627 = vmax.f32 %v598, 0.0
        %v628 = vmax.f32 %v601, 0.0
        %v629 = vmax.f32 %v603, 0.0
        %v630 = vmax.f32 %v606, 0.0
        %v631 = vmax.f32 %v608, 0.0
        %v632 = vmax.f32 %v611, 0.0
        %v633 = vmax.f32 %v613, 0.0
        %v634 = vmax.f32 %v616, 0.0
        %v635 = vmax.f32 %v618, 0.0
        %v636 = vperm.slane %v494, 0
        %v637 = vadd.f32 %v620, %v636
        %v638 = vadd.f32 %v621, %v636
        %v639 = vadd.f32 %v622, %v636
        %v640 = vadd.f32 %v623, %v636
        %v641 = vadd.f32 %v624, %v636
        %v642 = vadd.f32 %v625, %v636
        %v643 = vadd.f32 %v626, %v636
        %v644 = vadd.f32 %v627, %v636
        %v645 = vadd.f32 %v628, %v636
        %v646 = vadd.f32 %v629, %v636
        %v647 = vadd.f32 %v630, %v636
        %v648 = vadd.f32 %v631, %v636
        %v649 = vadd.f32 %v632, %v636
        %v650 = vadd.f32 %v633, %v636
        %v651 = vadd.f32 %v634, %v636
        %v652 = vadd.f32 %v635, %v636
        %v653 = vpack.c.bf16 %v638, %v637
        %v654 = vpack.c.bf16 %v640, %v639
        %v655 = vpack.c.bf16 %v642, %v641
        %v656 = vpack.c.bf16 %v644, %v643
        %v657 = vpack.c.bf16 %v646, %v645
        %v658 = vpack.c.bf16 %v648, %v647
        %v659 = vpack.c.bf16 %v650, %v649
        %v660 = vpack.c.bf16 %v652, %v651
        %v662 = vperm.slane %v390, 0
        %v680 = vunpack.c.l.b16 %v261
        %v681 = vunpack.c.l.b16 %v262
        %v682 = vunpack.c.l.b16 %v263
        %v683 = vunpack.c.l.b16 %v264
        %v684 = vunpack.c.l.b16 %v265
        %v685 = vunpack.c.l.b16 %v266
        %v686 = vunpack.c.l.b16 %v267
        %v687 = vunpack.c.l.b16 %v268
        %v688 = vunpack.c.l.b16 %v269
        %v689 = vunpack.c.l.b16 %v270
        %v690 = vunpack.c.l.b16 %v271
        %v691 = vunpack.c.l.b16 %v272
        %v692 = vunpack.c.l.b16 %v273
        %v693 = vunpack.c.l.b16 %v274
        %v694 = vunpack.c.l.b16 %v275
        %v695 = vunpack.c.l.b16 %v276
        %v696 = vpack.c.b16 %v681, %v680
        %v697 = vpack.c.b16 %v683, %v682
        %v698 = vpack.c.b16 %v685, %v684
        %v699 = vpack.c.b16 %v687, %v686
        %v700 = vpack.c.b16 %v689, %v688
        %v701 = vpack.c.b16 %v691, %v690
        %v702 = vpack.c.b16 %v693, %v692
        %v703 = vpack.c.b16 %v695, %v694
        %712 = vmatpush.bf16.msra.mxu0 %v703
        %713 = vmatpush.bf16.msra.mxu0 %v702
        %714 = vmatpush.bf16.msra.mxu0 %v701
        %715 = vmatpush.bf16.msra.mxu0 %v700
        %716 = vmatpush.bf16.msra.mxu0 %v699
        %717 = vmatpush.bf16.msra.mxu0 %v698
        %718 = vmatpush.bf16.msra.mxu0 %v697
        %719 = vmatpush.bf16.msra.mxu0 %v696
        %720 = vmatmul.bf16.gmra.mxu0 %v653
        %v721 = vpop.f32.mrf.mxu0
        %v722 = vadd.f32 %v662, %v721
        %v723 = vpop.f32.mrf.mxu0
        %v724 = vadd.f32 %v662, %v723
        %725 = vmatmul.bf16.gmra.mxu0 %v654
        %v726 = vpop.f32.mrf.mxu0
        %v727 = vadd.f32 %v662, %v726
        %v728 = vpop.f32.mrf.mxu0
        %v729 = vadd.f32 %v662, %v728
        %730 = vmatmul.bf16.gmra.mxu0 %v655
        %v731 = vpop.f32.mrf.mxu0
        %v732 = vadd.f32 %v662, %v731
        %v733 = vpop.f32.mrf.mxu0
        %v734 = vadd.f32 %v662, %v733
        %735 = vmatmul.bf16.gmra.mxu0 %v656
        %v736 = vpop.f32.mrf.mxu0
        %v737 = vadd.f32 %v662, %v736
        %v738 = vpop.f32.mrf.mxu0
        %v739 = vadd.f32 %v662, %v738
        %740 = vmatmul.bf16.gmra.mxu0 %v657
        %v741 = vpop.f32.mrf.mxu0
        %v742 = vadd.f32 %v662, %v741
        %v743 = vpop.f32.mrf.mxu0
        %v744 = vadd.f32 %v662, %v743
        %745 = vmatmul.bf16.gmra.mxu0 %v658
        %v746 = vpop.f32.mrf.mxu0
        %v747 = vadd.f32 %v662, %v746
        %v748 = vpop.f32.mrf.mxu0
        %v749 = vadd.f32 %v662, %v748
        %750 = vmatmul.bf16.gmra.mxu0 %v659
        %v751 = vpop.f32.mrf.mxu0
        %v752 = vadd.f32 %v662, %v751
        %v753 = vpop.f32.mrf.mxu0
        %v754 = vadd.f32 %v662, %v753
        %755 = vmatmul.bf16.gmra.mxu0 %v660
        %v756 = vpop.f32.mrf.mxu0
        %v757 = vadd.f32 %v662, %v756
        %v758 = vpop.f32.mrf.mxu0
        %v759 = vadd.f32 %v662, %v758
        %760 = vdwg.mxu0
        %v761 = vmax.f32 %v722, 0.0
        %v762 = vmax.f32 %v724, 0.0
        %v763 = vmax.f32 %v727, 0.0
        %v764 = vmax.f32 %v729, 0.0
        %v765 = vmax.f32 %v732, 0.0
        %v766 = vmax.f32 %v734, 0.0
        %v767 = vmax.f32 %v737, 0.0
        %v768 = vmax.f32 %v739, 0.0
        %v769 = vmax.f32 %v742, 0.0
        %v770 = vmax.f32 %v744, 0.0
        %v771 = vmax.f32 %v747, 0.0
        %v772 = vmax.f32 %v749, 0.0
        %v773 = vmax.f32 %v752, 0.0
        %v774 = vmax.f32 %v754, 0.0
        %v775 = vmax.f32 %v757, 0.0
        %v776 = vmax.f32 %v759, 0.0
        %v777 = vadd.f32 %v761, %v620
        %v778 = vadd.f32 %v762, %v621
        %v779 = vadd.f32 %v763, %v622
        %v780 = vadd.f32 %v764, %v623
        %v781 = vadd.f32 %v765, %v624
        %v782 = vadd.f32 %v766, %v625
        %v783 = vadd.f32 %v767, %v626
        %v784 = vadd.f32 %v768, %v627
        %v785 = vadd.f32 %v769, %v628
        %v786 = vadd.f32 %v770, %v629
        %v787 = vadd.f32 %v771, %v630
        %v788 = vadd.f32 %v772, %v631
        %v789 = vadd.f32 %v773, %v632
        %v790 = vadd.f32 %v774, %v633
        %v791 = vadd.f32 %v775, %v634
        %v792 = vadd.f32 %v776, %v635
        %v793 = vpack.c.bf16 %v778, %v777
        %v794 = vpack.c.bf16 %v780, %v779
        %v795 = vpack.c.bf16 %v782, %v781
        %v796 = vpack.c.bf16 %v784, %v783
        %v797 = vpack.c.bf16 %v786, %v785
        %v798 = vpack.c.bf16 %v788, %v787
        %v799 = vpack.c.bf16 %v790, %v789
        %v800 = vpack.c.bf16 %v792, %v791
        %v802 = vperm.slane %v391, 0
        %v820 = vunpack.c.l.b16 %v277
        %v821 = vunpack.c.l.b16 %v278
        %v822 = vunpack.c.l.b16 %v279
        %v823 = vunpack.c.l.b16 %v280
        %v824 = vunpack.c.l.b16 %v281
        %v825 = vunpack.c.l.b16 %v282
        %v826 = vunpack.c.l.b16 %v283
        %v827 = vunpack.c.l.b16 %v284
        %v828 = vunpack.c.l.b16 %v285
        %v829 = vunpack.c.l.b16 %v286
        %v830 = vunpack.c.l.b16 %v287
        %v831 = vunpack.c.l.b16 %v288
        %v832 = vunpack.c.l.b16 %v289
        %v833 = vunpack.c.l.b16 %v290
        %v834 = vunpack.c.l.b16 %v291
        %v835 = vunpack.c.l.b16 %v292
        %v836 = vpack.c.b16 %v821, %v820
        %v837 = vpack.c.b16 %v823, %v822
        %v838 = vpack.c.b16 %v825, %v824
        %v839 = vpack.c.b16 %v827, %v826
        %v840 = vpack.c.b16 %v829, %v828
        %v841 = vpack.c.b16 %v831, %v830
        %v842 = vpack.c.b16 %v833, %v832
        %v843 = vpack.c.b16 %v835, %v834
        %852 = vmatpush.bf16.msra.mxu0 %v843
        %853 = vmatpush.bf16.msra.mxu0 %v842
        %854 = vmatpush.bf16.msra.mxu0 %v841
        %855 = vmatpush.bf16.msra.mxu0 %v840
        %856 = vmatpush.bf16.msra.mxu0 %v839
        %857 = vmatpush.bf16.msra.mxu0 %v838
        %858 = vmatpush.bf16.msra.mxu0 %v837
        %859 = vmatpush.bf16.msra.mxu0 %v836
        %860 = vmatmul.bf16.gmra.mxu0 %v793
        %v861 = vpop.f32.mrf.mxu0
        %v862 = vadd.f32 %v802, %v861
        %v863 = vpop.f32.mrf.mxu0
        %v864 = vadd.f32 %v802, %v863
        %865 = vmatmul.bf16.gmra.mxu0 %v794
        %v866 = vpop.f32.mrf.mxu0
        %v867 = vadd.f32 %v802, %v866
        %v868 = vpop.f32.mrf.mxu0
        %v869 = vadd.f32 %v802, %v868
        %870 = vmatmul.bf16.gmra.mxu0 %v795
        %v871 = vpop.f32.mrf.mxu0
        %v872 = vadd.f32 %v802, %v871
        %v873 = vpop.f32.mrf.mxu0
        %v874 = vadd.f32 %v802, %v873
        %875 = vmatmul.bf16.gmra.mxu0 %v796
        %v876 = vpop.f32.mrf.mxu0
        %v877 = vadd.f32 %v802, %v876
        %v878 = vpop.f32.mrf.mxu0
        %v879 = vadd.f32 %v802, %v878
        %880 = vmatmul.bf16.gmra.mxu0 %v797
        %v881 = vpop.f32.mrf.mxu0
        %v882 = vadd.f32 %v802, %v881
        %v883 = vpop.f32.mrf.mxu0
        %v884 = vadd.f32 %v802, %v883
        %885 = vmatmul.bf16.gmra.mxu0 %v798
        %v886 = vpop.f32.mrf.mxu0
        %v887 = vadd.f32 %v802, %v886
        %v888 = vpop.f32.mrf.mxu0
        %v889 = vadd.f32 %v802, %v888
        %890 = vmatmul.bf16.gmra.mxu0 %v799
        %v891 = vpop.f32.mrf.mxu0
        %v892 = vadd.f32 %v802, %v891
        %v893 = vpop.f32.mrf.mxu0
        %v894 = vadd.f32 %v802, %v893
        %895 = vmatmul.bf16.gmra.mxu0 %v800
        %v896 = vpop.f32.mrf.mxu0
        %v897 = vadd.f32 %v802, %v896
        %v898 = vpop.f32.mrf.mxu0
        %v899 = vadd.f32 %v802, %v898
        %900 = vdwg.mxu0
        %v901 = vmax.f32 %v862, 0.0
        %v902 = vmax.f32 %v864, 0.0
        %v903 = vmax.f32 %v867, 0.0
        %v904 = vmax.f32 %v869, 0.0
        %v905 = vmax.f32 %v872, 0.0
        %v906 = vmax.f32 %v874, 0.0
        %v907 = vmax.f32 %v877, 0.0
        %v908 = vmax.f32 %v879, 0.0
        %v909 = vmax.f32 %v882, 0.0
        %v910 = vmax.f32 %v884, 0.0
        %v911 = vmax.f32 %v887, 0.0
        %v912 = vmax.f32 %v889, 0.0
        %v913 = vmax.f32 %v892, 0.0
        %v914 = vmax.f32 %v894, 0.0
        %v915 = vmax.f32 %v897, 0.0
        %v916 = vmax.f32 %v899, 0.0
        %v917 = vpack.c.bf16 %v902, %v901
        %v918 = vpack.c.bf16 %v904, %v903
        %v919 = vpack.c.bf16 %v906, %v905
        %v920 = vpack.c.bf16 %v908, %v907
        %v921 = vpack.c.bf16 %v910, %v909
        %v922 = vpack.c.bf16 %v912, %v911
        %v923 = vpack.c.bf16 %v914, %v913
        %v924 = vpack.c.bf16 %v916, %v915
        %v926 = vperm.slane %v392, 0
        %v944 = vunpack.c.l.b16 %v293
        %v945 = vunpack.c.l.b16 %v294
        %v946 = vunpack.c.l.b16 %v295
        %v947 = vunpack.c.l.b16 %v296
        %v948 = vunpack.c.l.b16 %v297
        %v949 = vunpack.c.l.b16 %v298
        %v950 = vunpack.c.l.b16 %v299
        %v951 = vunpack.c.l.b16 %v300
        %v952 = vunpack.c.l.b16 %v301
        %v953 = vunpack.c.l.b16 %v302
        %v954 = vunpack.c.l.b16 %v303
        %v955 = vunpack.c.l.b16 %v304
        %v956 = vunpack.c.l.b16 %v305
        %v957 = vunpack.c.l.b16 %v306
        %v958 = vunpack.c.l.b16 %v307
        %v959 = vunpack.c.l.b16 %v308
        %v960 = vpack.c.b16 %v945, %v944
        %v961 = vpack.c.b16 %v947, %v946
        %v962 = vpack.c.b16 %v949, %v948
        %v963 = vpack.c.b16 %v951, %v950
        %v964 = vpack.c.b16 %v953, %v952
        %v965 = vpack.c.b16 %v955, %v954
        %v966 = vpack.c.b16 %v957, %v956
        %v967 = vpack.c.b16 %v959, %v958
        %976 = vmatpush.bf16.msra.mxu0 %v967
        %977 = vmatpush.bf16.msra.mxu0 %v966
        %978 = vmatpush.bf16.msra.mxu0 %v965
        %979 = vmatpush.bf16.msra.mxu0 %v964
        %980 = vmatpush.bf16.msra.mxu0 %v963
        %981 = vmatpush.bf16.msra.mxu0 %v962
        %982 = vmatpush.bf16.msra.mxu0 %v961
        %983 = vmatpush.bf16.msra.mxu0 %v960
        %984 = vmatmul.bf16.gmra.mxu0 %v917
        %v985 = vpop.f32.mrf.mxu0
        %v986 = vadd.f32 %v926, %v985
        %v987 = vpop.f32.mrf.mxu0
        %v988 = vadd.f32 %v926, %v987
        %989 = vmatmul.bf16.gmra.mxu0 %v918
        %v990 = vpop.f32.mrf.mxu0
        %v991 = vadd.f32 %v926, %v990
        %v992 = vpop.f32.mrf.mxu0
        %v993 = vadd.f32 %v926, %v992
        %994 = vmatmul.bf16.gmra.mxu0 %v919
        %v995 = vpop.f32.mrf.mxu0
        %v996 = vadd.f32 %v926, %v995
        %v997 = vpop.f32.mrf.mxu0
        %v998 = vadd.f32 %v926, %v997
        %999 = vmatmul.bf16.gmra.mxu0 %v920
        %v1000 = vpop.f32.mrf.mxu0
        %v1001 = vadd.f32 %v926, %v1000
        %v1002 = vpop.f32.mrf.mxu0
        %v1003 = vadd.f32 %v926, %v1002
        %1004 = vmatmul.bf16.gmra.mxu0 %v921
        %v1005 = vpop.f32.mrf.mxu0
        %v1006 = vadd.f32 %v926, %v1005
        %v1007 = vpop.f32.mrf.mxu0
        %v1008 = vadd.f32 %v926, %v1007
        %1009 = vmatmul.bf16.gmra.mxu0 %v922
        %v1010 = vpop.f32.mrf.mxu0
        %v1011 = vadd.f32 %v926, %v1010
        %v1012 = vpop.f32.mrf.mxu0
        %v1013 = vadd.f32 %v926, %v1012
        %1014 = vmatmul.bf16.gmra.mxu0 %v923
        %v1015 = vpop.f32.mrf.mxu0
        %v1016 = vadd.f32 %v926, %v1015
        %v1017 = vpop.f32.mrf.mxu0
        %v1018 = vadd.f32 %v926, %v1017
        %1019 = vmatmul.bf16.gmra.mxu0 %v924
        %v1020 = vpop.f32.mrf.mxu0
        %v1021 = vadd.f32 %v926, %v1020
        %v1022 = vpop.f32.mrf.mxu0
        %v1023 = vadd.f32 %v926, %v1022
        %1024 = vdwg.mxu0
        %v1025 = vmax.f32 %v986, 0.0
        %v1026 = vmax.f32 %v988, 0.0
        %v1027 = vmax.f32 %v991, 0.0
        %v1028 = vmax.f32 %v993, 0.0
        %v1029 = vmax.f32 %v996, 0.0
        %v1030 = vmax.f32 %v998, 0.0
        %v1031 = vmax.f32 %v1001, 0.0
        %v1032 = vmax.f32 %v1003, 0.0
        %v1033 = vmax.f32 %v1006, 0.0
        %v1034 = vmax.f32 %v1008, 0.0
        %v1035 = vmax.f32 %v1011, 0.0
        %v1036 = vmax.f32 %v1013, 0.0
        %v1037 = vmax.f32 %v1016, 0.0
        %v1038 = vmax.f32 %v1018, 0.0
        %v1039 = vmax.f32 %v1021, 0.0
        %v1040 = vmax.f32 %v1023, 0.0
        %v1041 = vadd.f32 %v1025, %v901
        %v1042 = vadd.f32 %v1026, %v902
        %v1043 = vadd.f32 %v1027, %v903
        %v1044 = vadd.f32 %v1028, %v904
        %v1045 = vadd.f32 %v1029, %v905
        %v1046 = vadd.f32 %v1030, %v906
        %v1047 = vadd.f32 %v1031, %v907
        %v1048 = vadd.f32 %v1032, %v908
        %v1049 = vadd.f32 %v1033, %v909
        %v1050 = vadd.f32 %v1034, %v910
        %v1051 = vadd.f32 %v1035, %v911
        %v1052 = vadd.f32 %v1036, %v912
        %v1053 = vadd.f32 %v1037, %v913
        %v1054 = vadd.f32 %v1038, %v914
        %v1055 = vadd.f32 %v1039, %v915
        %v1056 = vadd.f32 %v1040, %v916
        %v1057 = vpack.c.bf16 %v1042, %v1041
        %v1058 = vpack.c.bf16 %v1044, %v1043
        %v1059 = vpack.c.bf16 %v1046, %v1045
        %v1060 = vpack.c.bf16 %v1048, %v1047
        %v1061 = vpack.c.bf16 %v1050, %v1049
        %v1062 = vpack.c.bf16 %v1052, %v1051
        %v1063 = vpack.c.bf16 %v1054, %v1053
        %v1064 = vpack.c.bf16 %v1056, %v1055
        %v1066 = vperm.slane %v393, 0
        %v1084 = vunpack.c.l.b16 %v309
        %v1085 = vunpack.c.l.b16 %v310
        %v1086 = vunpack.c.l.b16 %v311
        %v1087 = vunpack.c.l.b16 %v312
        %v1088 = vunpack.c.l.b16 %v313
        %v1089 = vunpack.c.l.b16 %v314
        %v1090 = vunpack.c.l.b16 %v315
        %v1091 = vunpack.c.l.b16 %v316
        %v1092 = vunpack.c.l.b16 %v317
        %v1093 = vunpack.c.l.b16 %v318
        %v1094 = vunpack.c.l.b16 %v319
        %v1095 = vunpack.c.l.b16 %v320
        %v1096 = vunpack.c.l.b16 %v321
        %v1097 = vunpack.c.l.b16 %v322
        %v1098 = vunpack.c.l.b16 %v323
        %v1099 = vunpack.c.l.b16 %v324
        %v1100 = vpack.c.b16 %v1085, %v1084
        %v1101 = vpack.c.b16 %v1087, %v1086
        %v1102 = vpack.c.b16 %v1089, %v1088
        %v1103 = vpack.c.b16 %v1091, %v1090
        %v1104 = vpack.c.b16 %v1093, %v1092
        %v1105 = vpack.c.b16 %v1095, %v1094
        %v1106 = vpack.c.b16 %v1097, %v1096
        %v1107 = vpack.c.b16 %v1099, %v1098
        %1116 = vmatpush.bf16.msra.mxu0 %v1107
        %1117 = vmatpush.bf16.msra.mxu0 %v1106
        %1118 = vmatpush.bf16.msra.mxu0 %v1105
        %1119 = vmatpush.bf16.msra.mxu0 %v1104
        %1120 = vmatpush.bf16.msra.mxu0 %v1103
        %1121 = vmatpush.bf16.msra.mxu0 %v1102
        %1122 = vmatpush.bf16.msra.mxu0 %v1101
        %1123 = vmatpush.bf16.msra.mxu0 %v1100
        %1124 = vmatmul.bf16.gmra.mxu0 %v1057
        %v1125 = vpop.f32.mrf.mxu0
        %v1126 = vadd.f32 %v1066, %v1125
        %v1127 = vpop.f32.mrf.mxu0
        %v1128 = vadd.f32 %v1066, %v1127
        %1129 = vmatmul.bf16.gmra.mxu0 %v1058
        %v1130 = vpop.f32.mrf.mxu0
        %v1131 = vadd.f32 %v1066, %v1130
        %v1132 = vpop.f32.mrf.mxu0
        %v1133 = vadd.f32 %v1066, %v1132
        %1134 = vmatmul.bf16.gmra.mxu0 %v1059
        %v1135 = vpop.f32.mrf.mxu0
        %v1136 = vadd.f32 %v1066, %v1135
        %v1137 = vpop.f32.mrf.mxu0
        %v1138 = vadd.f32 %v1066, %v1137
        %1139 = vmatmul.bf16.gmra.mxu0 %v1060
        %v1140 = vpop.f32.mrf.mxu0
        %v1141 = vadd.f32 %v1066, %v1140
        %v1142 = vpop.f32.mrf.mxu0
        %v1143 = vadd.f32 %v1066, %v1142
        %1144 = vmatmul.bf16.gmra.mxu0 %v1061
        %v1145 = vpop.f32.mrf.mxu0
        %v1146 = vadd.f32 %v1066, %v1145
        %v1147 = vpop.f32.mrf.mxu0
        %v1148 = vadd.f32 %v1066, %v1147
        %1149 = vmatmul.bf16.gmra.mxu0 %v1062
        %v1150 = vpop.f32.mrf.mxu0
        %v1151 = vadd.f32 %v1066, %v1150
        %v1152 = vpop.f32.mrf.mxu0
        %v1153 = vadd.f32 %v1066, %v1152
        %1154 = vmatmul.bf16.gmra.mxu0 %v1063
        %v1155 = vpop.f32.mrf.mxu0
        %v1156 = vadd.f32 %v1066, %v1155
        %v1157 = vpop.f32.mrf.mxu0
        %v1158 = vadd.f32 %v1066, %v1157
        %1159 = vmatmul.bf16.gmra.mxu0 %v1064
        %v1160 = vpop.f32.mrf.mxu0
        %v1161 = vadd.f32 %v1066, %v1160
        %v1162 = vpop.f32.mrf.mxu0
        %v1163 = vadd.f32 %v1066, %v1162
        %1164 = vdwg.mxu0
        %v1165 = vmax.f32 %v1126, 0.0
        %v1166 = vmax.f32 %v1128, 0.0
        %v1167 = vmax.f32 %v1131, 0.0
        %v1168 = vmax.f32 %v1133, 0.0
        %v1169 = vmax.f32 %v1136, 0.0
        %v1170 = vmax.f32 %v1138, 0.0
        %v1171 = vmax.f32 %v1141, 0.0
        %v1172 = vmax.f32 %v1143, 0.0
        %v1173 = vmax.f32 %v1146, 0.0
        %v1174 = vmax.f32 %v1148, 0.0
        %v1175 = vmax.f32 %v1151, 0.0
        %v1176 = vmax.f32 %v1153, 0.0
        %v1177 = vmax.f32 %v1156, 0.0
        %v1178 = vmax.f32 %v1158, 0.0
        %v1179 = vmax.f32 %v1161, 0.0
        %v1180 = vmax.f32 %v1163, 0.0
        %v1181 = vpack.c.bf16 %v1166, %v1165
        %v1182 = vpack.c.bf16 %v1168, %v1167
        %v1183 = vpack.c.bf16 %v1170, %v1169
        %v1184 = vpack.c.bf16 %v1172, %v1171
        %v1185 = vpack.c.bf16 %v1174, %v1173
        %v1186 = vpack.c.bf16 %v1176, %v1175
        %v1187 = vpack.c.bf16 %v1178, %v1177
        %v1188 = vpack.c.bf16 %v1180, %v1179
        %v1190 = vperm.slane %v394, 0
        %v1208 = vunpack.c.l.b16 %v325
        %v1209 = vunpack.c.l.b16 %v326
        %v1210 = vunpack.c.l.b16 %v327
        %v1211 = vunpack.c.l.b16 %v328
        %v1212 = vunpack.c.l.b16 %v329
        %v1213 = vunpack.c.l.b16 %v330
        %v1214 = vunpack.c.l.b16 %v331
        %v1215 = vunpack.c.l.b16 %v332
        %v1216 = vunpack.c.l.b16 %v333
        %v1217 = vunpack.c.l.b16 %v334
        %v1218 = vunpack.c.l.b16 %v335
        %v1219 = vunpack.c.l.b16 %v336
        %v1220 = vunpack.c.l.b16 %v337
        %v1221 = vunpack.c.l.b16 %v338
        %v1222 = vunpack.c.l.b16 %v339
        %v1223 = vunpack.c.l.b16 %v340
        %v1224 = vpack.c.b16 %v1209, %v1208
        %v1225 = vpack.c.b16 %v1211, %v1210
        %v1226 = vpack.c.b16 %v1213, %v1212
        %v1227 = vpack.c.b16 %v1215, %v1214
        %v1228 = vpack.c.b16 %v1217, %v1216
        %v1229 = vpack.c.b16 %v1219, %v1218
        %v1230 = vpack.c.b16 %v1221, %v1220
        %v1231 = vpack.c.b16 %v1223, %v1222
        %1240 = vmatpush.bf16.msra.mxu0 %v1231
        %1241 = vmatpush.bf16.msra.mxu0 %v1230
        %1242 = vmatpush.bf16.msra.mxu0 %v1229
        %1243 = vmatpush.bf16.msra.mxu0 %v1228
        %1244 = vmatpush.bf16.msra.mxu0 %v1227
        %1245 = vmatpush.bf16.msra.mxu0 %v1226
        %1246 = vmatpush.bf16.msra.mxu0 %v1225
        %1247 = vmatpush.bf16.msra.mxu0 %v1224
        %1248 = vmatmul.bf16.gmra.mxu0 %v1181
        %v1249 = vpop.f32.mrf.mxu0
        %v1250 = vadd.f32 %v1190, %v1249
        %v1251 = vpop.f32.mrf.mxu0
        %v1252 = vadd.f32 %v1190, %v1251
        %1253 = vmatmul.bf16.gmra.mxu0 %v1182
        %v1254 = vpop.f32.mrf.mxu0
        %v1255 = vadd.f32 %v1190, %v1254
        %v1256 = vpop.f32.mrf.mxu0
        %v1257 = vadd.f32 %v1190, %v1256
        %1258 = vmatmul.bf16.gmra.mxu0 %v1183
        %v1259 = vpop.f32.mrf.mxu0
        %v1260 = vadd.f32 %v1190, %v1259
        %v1261 = vpop.f32.mrf.mxu0
        %v1262 = vadd.f32 %v1190, %v1261
        %1263 = vmatmul.bf16.gmra.mxu0 %v1184
        %v1264 = vpop.f32.mrf.mxu0
        %v1265 = vadd.f32 %v1190, %v1264
        %v1266 = vpop.f32.mrf.mxu0
        %v1267 = vadd.f32 %v1190, %v1266
        %1268 = vmatmul.bf16.gmra.mxu0 %v1185
        %v1269 = vpop.f32.mrf.mxu0
        %v1270 = vadd.f32 %v1190, %v1269
        %v1271 = vpop.f32.mrf.mxu0
        %v1272 = vadd.f32 %v1190, %v1271
        %1273 = vmatmul.bf16.gmra.mxu0 %v1186
        %v1274 = vpop.f32.mrf.mxu0
        %v1275 = vadd.f32 %v1190, %v1274
        %v1276 = vpop.f32.mrf.mxu0
        %v1277 = vadd.f32 %v1190, %v1276
        %1278 = vmatmul.bf16.gmra.mxu0 %v1187
        %v1279 = vpop.f32.mrf.mxu0
        %v1280 = vadd.f32 %v1190, %v1279
        %v1281 = vpop.f32.mrf.mxu0
        %v1282 = vadd.f32 %v1190, %v1281
        %1283 = vmatmul.bf16.gmra.mxu0 %v1188
        %v1284 = vpop.f32.mrf.mxu0
        %v1285 = vadd.f32 %v1190, %v1284
        %v1286 = vpop.f32.mrf.mxu0
        %v1287 = vadd.f32 %v1190, %v1286
        %1288 = vdwg.mxu0
        %v1289 = vadd.f32 %v1250, %v636
        %v1290 = vadd.f32 %v1252, %v636
        %v1291 = vadd.f32 %v1255, %v636
        %v1292 = vadd.f32 %v1257, %v636
        %v1293 = vadd.f32 %v1260, %v636
        %v1294 = vadd.f32 %v1262, %v636
        %v1295 = vadd.f32 %v1265, %v636
        %v1296 = vadd.f32 %v1267, %v636
        %v1297 = vadd.f32 %v1270, %v636
        %v1298 = vadd.f32 %v1272, %v636
        %v1299 = vadd.f32 %v1275, %v636
        %v1300 = vadd.f32 %v1277, %v636
        %v1301 = vadd.f32 %v1280, %v636
        %v1302 = vadd.f32 %v1282, %v636
        %v1303 = vadd.f32 %v1285, %v636
        %v1304 = vadd.f32 %v1287, %v636
        %1305 = vst [vmem:[%s243] sm:$0xff] %v1289
        %1306 = vst [vmem:[%s243 + $0x8] sm:$0xff] %v1290
        %1307 = vst [vmem:[%s243 + $0x10] sm:$0xff] %v1291
        %1308 = vst [vmem:[%s243 + $0x18] sm:$0xff] %v1292
        %1309 = vst [vmem:[%s243 + $0x20] sm:$0xff] %v1293
        %1310 = vst [vmem:[%s243 + $0x28] sm:$0xff] %v1294
        %1311 = vst [vmem:[%s243 + $0x30] sm:$0xff] %v1295
        %1312 = vst [vmem:[%s243 + $0x38] sm:$0xff] %v1296
        %1313 = vst [vmem:[%s243 + $0x40] sm:$0xff] %v1297
        %1314 = vst [vmem:[%s243 + $0x48] sm:$0xff] %v1298
        %1315 = vst [vmem:[%s243 + $0x50] sm:$0xff] %v1299
        %1316 = vst [vmem:[%s243 + $0x58] sm:$0xff] %v1300
        %1317 = vst [vmem:[%s243 + $0x60] sm:$0xff] %v1301
        %1318 = vst [vmem:[%s243 + $0x68] sm:$0xff] %v1302
        %1319 = vst [vmem:[%s243 + $0x70] sm:$0xff] %v1303
        %1320 = vst [vmem:[%s243 + $0x78] sm:$0xff] %v1304
        %s1321 = smul.u32 16, %s17
        %p1322 = scmp.lt.s32.totalorder %s1321, 31
        %s1323 = scalar_select %p1322, %s1321, 31
        %s1324 = smul.addr %s1323, 8
        %s1325 = scalar_lea.vmem %s5, %s1324
        // Predicated region
        $region45: #{fc_model_graph_forward.1} parent=39 // pred_check
          %p1326 = pneg %p145
        $region46: #{fc_model_graph_forward.1} parent=39 // pred_check_branch
          %1328 = sbr.rel (%p1326) target = $region48
        $region47: #{fc_model_graph_forward.1} parent=39 // pred_region
          %s1329 = smul.u32 16, %s17
        $region48: #{fc_model_graph_forward.1} parent=39 // pred_fallthru
          _
      $region40: #{fc_model_graph_forward.1} parent=5 // pred_fallthru
        _
      %p1330 = scmp.le.s32.totalorder 2, %s12
      // Predicated region
      $region49: #{fc_model_graph_forward.1} parent=5 // pred_check
        %p1331 = pneg %p1330
      $region50: #{fc_model_graph_forward.1} parent=5 // pred_check_branch
        %1333 = sbr.rel (%p1331) target = $region52
      $region51: #{fc_model_graph_forward.1} parent=5 // pred_region
        %s1334 = ssub.s32 %s12, 2
        // Predicated region
        $region53: #{fc_model_graph_forward.1} parent=51 // pred_check
          %p1335 = pneg %p151
        $region54: #{fc_model_graph_forward.1} parent=51 // pred_check_branch
          %1337 = sbr.rel (%p1335) target = $region56
        $region55: #{fc_model_graph_forward.1} parent=51 // pred_region
          %s1338 = smul.u32 16, %s18
          %p1339 = scmp.lt.s32.totalorder %s1338, 31
          %s1340 = scalar_select %p1339, %s1338, 31
          %s1341 = smul.addr %s1340, 8
          %s1342 = scalar_lea.vmem %s5, %s1341
        $region56: #{fc_model_graph_forward.1} parent=51 // pred_fallthru
          _
      $region52: #{fc_model_graph_forward.1} parent=5 // pred_fallthru
        _
    $region6: #{fc_model_graph_forward.1} parent=1 // loop_footer
      %s16 = sadd.s32 1, %s12
    $region7: #{fc_model_graph_forward.1} parent=1 // loop_footer_branch
      %11 = sbr.rel target = $region3
    $region8: #{fc_model_graph_forward.1} parent=1 // loop_exit
      _
    %1343 = vsyncpa [#allocation3], 1
    %s1344 = scalar_lea.sflag [#allocation3], 1
    %1345 = vsyncpa %s1344, 1

</llo_original>
